<compile_context>
chip_gen: v7x
topology: tpu7x:2x2x1
jax: 0.10.0
libtpu: 0.0.40
codegen_flags: <defaults>
</compile_context>

<pallas_src>
import functools

import jax
import jax.numpy as jnp
from jax.experimental import pallas as pl
from jax.experimental.pallas import tpu as pltpu


def _global_mixing_kernel(x_ref, wqkv_ref, wo_ref, b_ref, o_ref, *,
                          heads, dim_head):
    hidden = heads * dim_head
    x = x_ref[...]                                                  # (C, N)
    n = x.shape[-1]

    # Single stacked QKV projection (1x1 conv == channel matmul), f32 accumulate.
    qkv = jnp.dot(wqkv_ref[...], x,
                  preferred_element_type=jnp.float32)               # (3H, N)
    q = qkv[0 * hidden:1 * hidden, :]                                # (H, N)
    k = qkv[1 * hidden:2 * hidden, :]                                # (H, N)
    v = qkv[2 * hidden:3 * hidden, :]                                # (H, N)

    # softmax(k) over the spatial axis N (numerically stable, f32).
    k_max = jnp.max(k, axis=-1, keepdims=True)
    k_exp = jnp.exp(k - k_max)
    inv_den = pl.reciprocal(jnp.sum(k_exp, axis=-1, keepdims=True),
                            approx=False)                            # (H, 1)
    k_sm = k_exp * inv_den                                           # (H, N)

    # Per-head views (leading-dim split only; lane axis N untouched).
    q3 = q.reshape(heads, dim_head, n)
    k3 = k_sm.reshape(heads, dim_head, n)
    v3 = v.reshape(heads, dim_head, n)

    # context_t[h, e, d] = sum_n v[h, e, n] * k[h, d, n]     -> (heads, dh, dh)
    # (canonical "QK^T" form: both operands contract on the lane axis.)
    context_t = jnp.einsum('hen,hdn->hed', v3, k3,
                           preferred_element_type=jnp.float32)
    # out[h, e, n] = sum_d context_t[h, e, d] * q[h, d, n]   -> (heads, dh, N)
    # (canonical "P@V" form: lhs contracts on its last dim, rhs on sublanes.)
    out3 = jnp.einsum('hed,hdn->hen', context_t, q3,
                      preferred_element_type=jnp.float32)
    out = out3.reshape(hidden, n)                                    # (H, N)

    # Output 1x1 conv over the full hidden dim (K=hidden) + fused bias.
    y = jnp.dot(wo_ref[...], out,
                preferred_element_type=jnp.float32) + b_ref[...]     # (C, N)
    o_ref[...] = y.astype(o_ref.dtype)


def _vmem_limit_bytes(C, N, hidden):
    """Shape-derived VMEM budget (double-buffered blocks + intermediates),
    clamped to the chip's physical VMEM."""
    est = 4 * (
        2 * C * N                 # x blocks (double-buffered)
        + 2 * C * N               # output blocks (double-buffered)
        + 2 * 3 * hidden * C      # qkv weights
        + 2 * C * hidden          # output weights
        + 3 * hidden * N          # qkv intermediate
        + 3 * hidden * N          # softmax temps / per-head views
        + hidden * N              # out intermediate
    )
    est = int(est * 1.5) + (4 << 20)          # headroom
    try:
        cap = getattr(pltpu.get_tpu_info(), "vmem_capacity_bytes", 64 << 20)
    except Exception:  # pragma: no cover - off-TPU fallback
        cap = 64 << 20
    return max(32 << 20, min(est, int(cap * 3 // 4)))


class GlobalMixing:
    """Pallas equivalent of diffuser.models.temporal.GlobalMixing."""

    def __init__(self, w_qkv, w_out, b_out, heads):
        # w_qkv: (3*hidden, dim)  == Conv2d(dim, 3*hidden, 1, bias=False) weight
        # w_out: (dim, hidden)    == Conv2d(hidden, dim, 1) weight
        # b_out: (dim,)           == Conv2d(hidden, dim, 1) bias
        dim, hidden = w_out.shape
        assert hidden % heads == 0
        assert w_qkv.shape == (3 * hidden, dim)
        self.heads = heads
        self.dim_head = hidden // heads
        self.hidden = hidden
        # Keep the stacked (3*hidden, dim) weight — one QKV matmul per batch.
        self.w_qkv = jnp.asarray(w_qkv, jnp.float32)
        self.w_out = jnp.asarray(w_out, jnp.float32)
        self.bias = jnp.asarray(b_out, jnp.float32).reshape(dim, 1)

    def __call__(self, x):
        B, C, H, W = x.shape
        N = H * W
        hidden = self.hidden
        x_flat = x.reshape(B, C, N)

        kernel = functools.partial(_global_mixing_kernel,
                                   heads=self.heads, dim_head=self.dim_head)

        out_flat = pl.pallas_call(
            kernel,
            out_shape=jax.ShapeDtypeStruct((B, C, N), x.dtype),
            grid_spec=pltpu.PrefetchScalarGridSpec(
                num_scalar_prefetch=0,
                grid=(B,),
                in_specs=[
                    # x slab for this batch element.
                    pl.BlockSpec((None, C, N), lambda b: (b, 0, 0)),
                    # Stacked QKV weight, output weight and bias stay resident.
                    pl.BlockSpec((3 * hidden, C), lambda b: (0, 0)),
                    pl.BlockSpec((C, hidden), lambda b: (0, 0)),
                    pl.BlockSpec((C, 1), lambda b: (0, 0)),
                ],
                out_specs=pl.BlockSpec((None, C, N), lambda b: (b, 0, 0)),
            ),
            compiler_params=pltpu.CompilerParams(
                dimension_semantics=("parallel",),
                vmem_limit_bytes=_vmem_limit_bytes(C, N, hidden),
            ),
        )(x_flat, self.w_qkv, self.w_out, self.bias)

        return out_flat.reshape(B, C, H, W)


def _global_mixing_ref(x, w_qkv, w_out, b_out, heads):
    """Pure-JAX reference, mirrors the PyTorch forward exactly."""
    B, C, H, W = x.shape
    N = H * W
    hidden = w_out.shape[1]
    dh = hidden // heads
    hp = jax.lax.Precision.HIGHEST
    x_flat = x.reshape(B, C, N)
    qkv = jnp.einsum("oc,bcn->bon", w_qkv, x_flat, precision=hp)
    qkv = qkv.reshape(B, 3, heads, dh, N)
    q, k, v = qkv[:, 0], qkv[:, 1], qkv[:, 2]
    k = jax.nn.softmax(k, axis=-1)
    context = jnp.einsum("bhdn,bhen->bhde", k, v, precision=hp)
    out = jnp.einsum("bhde,bhdn->bhen", context, q, precision=hp)
    out = out.reshape(B, hidden, N)
    y = jnp.einsum("oc,bcn->bon", w_out, out, precision=hp) + b_out[None, :, None]
    return y.reshape(B, C, H, W)


if __name__ == "__main__":
    key = jax.random.PRNGKey(0)
    kx, kqkv, kwo, kbo = jax.random.split(key, 4)

    # Small shapes consistent with the module: batch=2, channels=8, 16x16 map,
    # 4 heads of dim_head=32 (hidden = 128).
    B, C, H, W = 2, 8, 16, 16
    heads, dim_head = 4, 32
    hidden = heads * dim_head

    x = jax.random.normal(kx, (B, C, H, W), dtype=jnp.float32)
    w_qkv = jax.random.normal(kqkv, (3 * hidden, C), dtype=jnp.float32) * 0.2
    w_out = jax.random.normal(kwo, (C, hidden), dtype=jnp.float32) * 0.2
    b_out = jax.random.normal(kbo, (C,), dtype=jnp.float32) * 0.2

    mod = GlobalMixing(w_qkv, w_out, b_out, heads=heads)
    out = jax.block_until_ready(mod(x))

    ref = _global_mixing_ref(x, w_qkv, w_out, b_out, heads)
    assert out.shape == ref.shape and out.dtype == x.dtype
    max_err = float(jnp.max(jnp.abs(out - ref)))
    assert jnp.allclose(out, ref, atol=1e-3, rtol=1e-3), max_err
    print("KERNEL_OK")
</pallas_src>

<mosaic_0001>
module attributes {stable_mosaic.version = 11 : i64} {
  func.func @_global_mixing_kernel(%arg0: i32, %arg1: memref<1x8x256xf32, #tpu.memory_space<vmem>>, %arg2: memref<384x8xf32, #tpu.memory_space<vmem>>, %arg3: memref<8x128xf32, #tpu.memory_space<vmem>>, %arg4: memref<8x1xf32, #tpu.memory_space<vmem>>, %arg5: memref<1x8x256xf32, #tpu.memory_space<vmem>>) attributes {dimension_semantics = [#tpu.dimension_semantics<parallel>], iteration_bounds = array<i64: 2>, scalar_prefetch = 0 : i64, scratch_operands = 0 : i64, tpu.core_type = #tpu.core_type<tc>, window_params = [{transform_indices = @transform_0, window_bounds = array<i64: 1, 8, 256>}, {pipeline_mode = #tpu.pipeline_mode<synchronous>, transform_indices = @transform_1, window_bounds = array<i64: 384, 8>}, {pipeline_mode = #tpu.pipeline_mode<synchronous>, transform_indices = @transform_2, window_bounds = array<i64: 8, 128>}, {pipeline_mode = #tpu.pipeline_mode<synchronous>, transform_indices = @transform_3, window_bounds = array<i64: 8, 1>}, {transform_indices = @transform_4, window_bounds = array<i64: 1, 8, 256>}]} {
    %c0 = arith.constant 0 : index
    %c0_0 = arith.constant 0 : index
    %c0_1 = arith.constant 0 : index
    %0 = vector.load %arg1[%c0, %c0_0, %c0_1] : memref<1x8x256xf32, #tpu.memory_space<vmem>>, vector<1x8x256xf32>
    %1 = vector.shape_cast %0 : vector<1x8x256xf32> to vector<8x256xf32>
    %c0_2 = arith.constant 0 : index
    %c0_3 = arith.constant 0 : index
    %2 = vector.load %arg2[%c0_2, %c0_3] : memref<384x8xf32, #tpu.memory_space<vmem>>, vector<384x8xf32>
    %cst = arith.constant dense<0.000000e+00> : vector<384x256xf32>
    %3 = tpu.matmul %2, %1, %cst {dimension_numbers = #tpu.dot_dimension_numbers<[1], [0], [0], [1], [0, 0, 1, 1], [], []>} : vector<384x8xf32>, vector<8x256xf32>, vector<384x256xf32> -> vector<384x256xf32>
    %4 = vector.extract_strided_slice %3 {offsets = [0, 0], sizes = [128, 256], strides = [1, 1]} : vector<384x256xf32> to vector<128x256xf32>
    %5 = vector.extract_strided_slice %3 {offsets = [128, 0], sizes = [128, 256], strides = [1, 1]} : vector<384x256xf32> to vector<128x256xf32>
    %6 = vector.extract_strided_slice %3 {offsets = [256, 0], sizes = [128, 256], strides = [1, 1]} : vector<384x256xf32> to vector<128x256xf32>
    %cst_4 = arith.constant dense<0xFF800000> : vector<128xf32>
    %7 = vector.multi_reduction <maximumf>, %5, %cst_4 [1] : vector<128x256xf32> to vector<128xf32>
    %8 = vector.shape_cast %7 : vector<128xf32> to vector<128x1xf32>
    %9 = vector.broadcast %8 : vector<128x1xf32> to vector<128x256xf32>
    %10 = arith.subf %5, %9 : vector<128x256xf32>
    %11 = math.exp %10 : vector<128x256xf32>
    %cst_5 = arith.constant dense<0.000000e+00> : vector<128xf32>
    %12 = vector.multi_reduction <add>, %11, %cst_5 [1] : vector<128x256xf32> to vector<128xf32>
    %13 = vector.shape_cast %12 : vector<128xf32> to vector<128x1xf32>
    %14 = tpu.reciprocal %13 : vector<128x1xf32> -> vector<128x1xf32>
    %15 = vector.broadcast %14 : vector<128x1xf32> to vector<128x256xf32>
    %16 = arith.mulf %11, %15 : vector<128x256xf32>
    %17 = vector.shape_cast %4 : vector<128x256xf32> to vector<4x32x256xf32>
    %18 = vector.shape_cast %16 : vector<128x256xf32> to vector<4x32x256xf32>
    %19 = vector.shape_cast %6 : vector<128x256xf32> to vector<4x32x256xf32>
    "tpu.trace_start"() <{level = 10 : i32, message = "hen,hdn->hed"}> : () -> ()
    %cst_6 = arith.constant dense<0.000000e+00> : vector<4x32x32xf32>
    %20 = tpu.matmul %19, %18, %cst_6 {dimension_numbers = #tpu.dot_dimension_numbers<[2], [2], [1], [1], [0, 0, 0, 1, 1, 1], [0], [0]>} : vector<4x32x256xf32>, vector<4x32x256xf32>, vector<4x32x32xf32> -> vector<4x32x32xf32>
    "tpu.trace_stop"() : () -> ()
    "tpu.trace_start"() <{level = 10 : i32, message = "hed,hdn->hen"}> : () -> ()
    %cst_7 = arith.constant dense<0.000000e+00> : vector<4x32x256xf32>
    %21 = tpu.matmul %20, %17, %cst_7 {dimension_numbers = #tpu.dot_dimension_numbers<[2], [1], [1], [2], [0, 0, 0, 1, 1, 2], [0], [0]>} : vector<4x32x32xf32>, vector<4x32x256xf32>, vector<4x32x256xf32> -> vector<4x32x256xf32>
    "tpu.trace_stop"() : () -> ()
    %22 = vector.shape_cast %21 : vector<4x32x256xf32> to vector<128x256xf32>
    %c0_8 = arith.constant 0 : index
    %c0_9 = arith.constant 0 : index
    %23 = vector.load %arg3[%c0_8, %c0_9] : memref<8x128xf32, #tpu.memory_space<vmem>>, vector<8x128xf32>
    %cst_10 = arith.constant dense<0.000000e+00> : vector<8x256xf32>
    %24 = tpu.matmul %23, %22, %cst_10 {dimension_numbers = #tpu.dot_dimension_numbers<[1], [0], [0], [1], [0, 0, 1, 1], [], []>} : vector<8x128xf32>, vector<128x256xf32>, vector<8x256xf32> -> vector<8x256xf32>
    %c0_11 = arith.constant 0 : index
    %c0_12 = arith.constant 0 : index
    %25 = vector.load %arg4[%c0_11, %c0_12] : memref<8x1xf32, #tpu.memory_space<vmem>>, vector<8x1xf32>
    %26 = vector.broadcast %25 : vector<8x1xf32> to vector<8x256xf32>
    %27 = arith.addf %24, %26 : vector<8x256xf32>
    %c0_13 = arith.constant 0 : index
    %c0_14 = arith.constant 0 : index
    %c0_15 = arith.constant 0 : index
    %28 = vector.load %arg5[%c0_13, %c0_14, %c0_15] : memref<1x8x256xf32, #tpu.memory_space<vmem>>, vector<1x8x256xf32>
    %29 = vector.shape_cast %28 : vector<1x8x256xf32> to vector<8x256xf32>
    %30 = vector.shape_cast %27 : vector<8x256xf32> to vector<1x8x256xf32>
    tpu.vector_store %arg5[%c0_13, %c0_14, %c0_15], %30 {strides = array<i32>} : memref<1x8x256xf32, #tpu.memory_space<vmem>>, vector<1x8x256xf32>,
    return
  }
  func.func @transform_0(%arg0: i32) -> (i32, i32, i32) {
    %c0_i32 = arith.constant 0 : i32
    %c0_i32_0 = arith.constant 0 : i32
    %c0_i32_1 = arith.constant 0 : i32
    return %arg0, %c0_i32, %c0_i32_0 : i32, i32, i32
  }
  func.func @transform_1(%arg0: i32) -> (i32, i32) {
    %c0_i32 = arith.constant 0 : i32
    %c0_i32_0 = arith.constant 0 : i32
    %c0_i32_1 = arith.constant 0 : i32
    return %c0_i32, %c0_i32_0 : i32, i32
  }
  func.func @transform_2(%arg0: i32) -> (i32, i32) {
    %c0_i32 = arith.constant 0 : i32
    %c0_i32_0 = arith.constant 0 : i32
    %c0_i32_1 = arith.constant 0 : i32
    return %c0_i32, %c0_i32_0 : i32, i32
  }
  func.func @transform_3(%arg0: i32) -> (i32, i32) {
    %c0_i32 = arith.constant 0 : i32
    %c0_i32_0 = arith.constant 0 : i32
    %c0_i32_1 = arith.constant 0 : i32
    return %c0_i32, %c0_i32_0 : i32, i32
  }
  func.func @transform_4(%arg0: i32) -> (i32, i32, i32) {
    %c0_i32 = arith.constant 0 : i32
    %c0_i32_0 = arith.constant 0 : i32
    %c0_i32_1 = arith.constant 0 : i32
    return %arg0, %c0_i32, %c0_i32_0 : i32, i32, i32
  }
}

</mosaic_0001>

<llo_original>
// kernel: tpu_custom_call.1
$region0: #{tpu_custom_call.1}
  #allocation0 [shape = 'u32[]', space=smem, size = 0x4, offset = 0x4, fixed_abs, tag = 'smem constant byte address 0x4 - core index']
  #allocation1 [shape = 'u32[144,128]{1,0:T(1,128)}', space=vmem, size = 0x12000, scoped, tag = 'internal scratch']
  %s0 = inlined_call_operand.vmem [shape: f32[2,8,256], index: 0, kind: input, shape index: {}]
  %s1 = inlined_call_operand.vmem [shape: f32[384,8], index: 1, kind: input, shape index: {}]
  %s2 = inlined_call_operand.vmem [shape: f32[8,128], index: 2, kind: input, shape index: {}]
  %s3 = inlined_call_operand.vmem [shape: f32[8,1], index: 3, kind: input, shape index: {}]
  %s4 = inlined_call_operand.hbm [shape: f32[2,8,256], index: 4, kind: output, shape index: {}]
  %s5 = sld [smem:[#allocation0]]
  $region49: #{tpu_custom_call.1} parent=0
    _
  %s7 = ssub.s32 1, %s5
  %s8 = scalar_select 0, %s7, %s5
  $region1: #{tpu_custom_call.1} parent=0
    #allocation2 [shape = 'u8[16384]{0}', space=vmem, size = 0x4000, scoped, tag = 'output window, operand 0']
    #allocation3 [shape = 's32[2]{0}', space=sflag, size = 0x8, scoped, tag = 'scoped memory for tpu_custom_call.1']
    %9 = vsyncpa [#allocation3], 0
    %s10 = scalar_lea.sflag [#allocation3], 1
    %11 = vsyncpa %s10, 0
    loop: start=0, step=1, limit=4
    $region2: #{tpu_custom_call.1} parent=1 // loop_pre_header
      _
    $region3: #{tpu_custom_call.1} parent=1 // loop_header
      %s13 = sphi 0, %s17
      %p14 = scmp.ge.s32.totalorder %s13, 4
      %s23 = sphi 0, %s25
      %s26 = sphi 0, %s23
      %s27 = sphi 0, %s26
      %s43 = sphi 0, %s27
      %s47 = sphi 0, %s47
      %s49 = sphi 0, %s47
      %s50 = sphi 0, %s49
      %s64 = sphi 0, %s50
      %s68 = sphi 0, %s68
      %s70 = sphi 0, %s68
      %s71 = sphi 0, %s70
      %s85 = sphi 0, %s71
      %s89 = sphi 0, %s89
      %s91 = sphi 0, %s89
      %s92 = sphi 0, %s91
      %s106 = sphi 0, %s92
      %s112 = sphi 0, %s114
      %s115 = sphi 0, %s112
      %s116 = sphi 0, %s115
      %s132 = sphi 0, %s116
    $region4: #{tpu_custom_call.1} parent=1 // loop_header_branch
      %16 = sbr.rel (%p14) target = $region8
    $region5: #{tpu_custom_call.1} parent=1 // loop_body
      %s18 = ssub.s32 %s13, 1
      %s19 = ssub.s32 %s13, 2
      %s20 = sadd.s32 %s13, 1
      %s21 = ssub.s32 %s13, %s20
      %p22 = scmp.eq.s32.totalorder %s21, 0
      %s24 = sadd.s32 %s23, 1
      %s25 = scalar_select %p22, %s23, %s24
      %p28 = pneg %p22
      %p29 = scmp.eq.s32.totalorder %s13, 1
      %p30 = por %p28, %p29
      %p31 = scmp.ne.s32.totalorder %s23, %s26
      %p32 = scmp.eq.s32.totalorder %s13, 0
      %p33 = por %p31, %p32
      %p34 = scmp.ne.s32.totalorder %s23, %s26
      %p35 = scmp.eq.s32.totalorder %s18, 1
      %p36 = por %p34, %p35
      %p37 = scmp.ne.s32.totalorder %s26, %s27
      %p38 = scmp.eq.s32.totalorder %s18, 0
      %p39 = por %p37, %p38
      %p40 = scmp.ne.s32.totalorder %s26, %s27
      %p41 = scmp.eq.s32.totalorder %s19, 1
      %p42 = por %p40, %p41
      %p44 = scmp.ne.s32.totalorder %s27, %s43
      %p45 = scmp.eq.s32.totalorder %s19, 0
      %p46 = por %p44, %p45
      %s48 = sadd.s32 %s47, 1
      %p51 = scmp.eq.s32.totalorder %s13, 1
      %p52 = scmp.ne.s32.totalorder %s47, %s49
      %p53 = scmp.eq.s32.totalorder %s13, 0
      %p54 = por %p52, %p53
      %p55 = scmp.ne.s32.totalorder %s47, %s49
      %p56 = scmp.eq.s32.totalorder %s18, 1
      %p57 = por %p55, %p56
      %p58 = scmp.ne.s32.totalorder %s49, %s50
      %p59 = scmp.eq.s32.totalorder %s18, 0
      %p60 = por %p58, %p59
      %p61 = scmp.ne.s32.totalorder %s49, %s50
      %p62 = scmp.eq.s32.totalorder %s19, 1
      %p63 = por %p61, %p62
      %p65 = scmp.ne.s32.totalorder %s50, %s64
      %p66 = scmp.eq.s32.totalorder %s19, 0
      %p67 = por %p65, %p66
      %s69 = sadd.s32 %s68, 1
      %p72 = scmp.eq.s32.totalorder %s13, 1
      %p73 = scmp.ne.s32.totalorder %s68, %s70
      %p74 = scmp.eq.s32.totalorder %s13, 0
      %p75 = por %p73, %p74
      %p76 = scmp.ne.s32.totalorder %s68, %s70
      %p77 = scmp.eq.s32.totalorder %s18, 1
      %p78 = por %p76, %p77
      %p79 = scmp.ne.s32.totalorder %s70, %s71
      %p80 = scmp.eq.s32.totalorder %s18, 0
      %p81 = por %p79, %p80
      %p82 = scmp.ne.s32.totalorder %s70, %s71
      %p83 = scmp.eq.s32.totalorder %s19, 1
      %p84 = por %p82, %p83
      %p86 = scmp.ne.s32.totalorder %s71, %s85
      %p87 = scmp.eq.s32.totalorder %s19, 0
      %p88 = por %p86, %p87
      %s90 = sadd.s32 %s89, 1
      %p93 = scmp.eq.s32.totalorder %s13, 1
      %p94 = scmp.ne.s32.totalorder %s89, %s91
      %p95 = scmp.eq.s32.totalorder %s13, 0
      %p96 = por %p94, %p95
      %p97 = scmp.ne.s32.totalorder %s89, %s91
      %p98 = scmp.eq.s32.totalorder %s18, 1
      %p99 = por %p97, %p98
      %p100 = scmp.ne.s32.totalorder %s91, %s92
      %p101 = scmp.eq.s32.totalorder %s18, 0
      %p102 = por %p100, %p101
      %p103 = scmp.ne.s32.totalorder %s91, %s92
      %p104 = scmp.eq.s32.totalorder %s19, 1
      %p105 = por %p103, %p104
      %p107 = scmp.ne.s32.totalorder %s92, %s106
      %p108 = scmp.eq.s32.totalorder %s19, 0
      %p109 = por %p107, %p108
      %s110 = ssub.s32 %s13, %s20
      %p111 = scmp.eq.s32.totalorder %s110, 0
      %s113 = sadd.s32 %s112, 1
      %s114 = scalar_select %p111, %s112, %s113
      %p117 = pneg %p111
      %p118 = scmp.eq.s32.totalorder %s13, 1
      %p119 = por %p117, %p118
      %p120 = scmp.ne.s32.totalorder %s112, %s115
      %p121 = scmp.eq.s32.totalorder %s13, 0
      %p122 = por %p120, %p121
      %p123 = scmp.ne.s32.totalorder %s112, %s115
      %p124 = scmp.eq.s32.totalorder %s18, 1
      %p125 = por %p123, %p124
      %p126 = scmp.ne.s32.totalorder %s115, %s116
      %p127 = scmp.eq.s32.totalorder %s18, 0
      %p128 = por %p126, %p127
      %p129 = scmp.ne.s32.totalorder %s115, %s116
      %p130 = scmp.eq.s32.totalorder %s19, 1
      %p131 = por %p129, %p130
      %p133 = scmp.ne.s32.totalorder %s116, %s132
      %p134 = scmp.eq.s32.totalorder %s19, 0
      %p135 = por %p133, %p134
      %p136 = scmp.le.s32.totalorder 1, %s13
      %p137 = scmp.lt.s32.totalorder %s13, 3
      %p138 = pnand %p136, %p137
      %p139 = pneg %p138
      // Predicated region
      $region9: #{tpu_custom_call.1} parent=5 // pred_check
        _
      $region10: #{tpu_custom_call.1} parent=5 // pred_check_branch
        %141 = sbr.rel (%p138) target = $region12
      $region11: #{tpu_custom_call.1} parent=5 // pred_region
        %s142 = ssub.s32 %s13, 1
        // Predicated region
        $region13: #{tpu_custom_call.1} parent=11 // pred_check
          %p143 = pneg %p60
        $region14: #{tpu_custom_call.1} parent=11 // pred_check_branch
          %145 = sbr.rel (%p143) target = $region16
        $region15: #{tpu_custom_call.1} parent=11 // pred_region
          _
        $region16: #{tpu_custom_call.1} parent=11 // pred_fallthru
          _
        // Predicated region
        $region17: #{tpu_custom_call.1} parent=11 // pred_check
          %p146 = pneg %p81
        $region18: #{tpu_custom_call.1} parent=11 // pred_check_branch
          %148 = sbr.rel (%p146) target = $region20
        $region19: #{tpu_custom_call.1} parent=11 // pred_region
          _
        $region20: #{tpu_custom_call.1} parent=11 // pred_fallthru
          _
        // Predicated region
        $region21: #{tpu_custom_call.1} parent=11 // pred_check
          %p149 = pneg %p102
        $region22: #{tpu_custom_call.1} parent=11 // pred_check_branch
          %151 = sbr.rel (%p149) target = $region24
        $region23: #{tpu_custom_call.1} parent=11 // pred_region
          _
        $region24: #{tpu_custom_call.1} parent=11 // pred_fallthru
          _
      $region12: #{tpu_custom_call.1} parent=5 // pred_fallthru
        _
      %p152 = scmp.lt.s32.totalorder %s13, 2
      // Predicated region
      $region25: #{tpu_custom_call.1} parent=5 // pred_check
        %p153 = pneg %p152
      $region26: #{tpu_custom_call.1} parent=5 // pred_check_branch
        %155 = sbr.rel (%p153) target = $region28
      $region27: #{tpu_custom_call.1} parent=5 // pred_region
        // Predicated region
        $region29: #{tpu_custom_call.1} parent=27 // pred_check
          %p156 = pneg %p33
        $region30: #{tpu_custom_call.1} parent=27 // pred_check_branch
          %158 = sbr.rel (%p156) target = $region32
        $region31: #{tpu_custom_call.1} parent=27 // pred_region
          %p159 = scmp.lt.s32.totalorder %s13, 1
          %s160 = scalar_select %p159, %s13, 1
          %s161 = smul.addr %s160, 2
          %s162 = smul.addr %s161, 8
          %s163 = scalar_lea.vmem %s0, %s162
        $region32: #{tpu_custom_call.1} parent=27 // pred_fallthru
          _
      $region28: #{tpu_custom_call.1} parent=5 // pred_fallthru
        _
      %p164 = scmp.le.s32.totalorder 1, %s13
      %p165 = scmp.lt.s32.totalorder %s13, 3
      %p166 = pnand %p164, %p165
      %p167 = pneg %p166
      // Predicated region
      $region33: #{tpu_custom_call.1} parent=5 // pred_check
        _
      $region34: #{tpu_custom_call.1} parent=5 // pred_check_branch
        %169 = sbr.rel (%p166) target = $region36
      $region35: #{tpu_custom_call.1} parent=5 // pred_region
        %s170 = ssub.s32 %s13, 1
        %p171 = scmp.lt.s32.totalorder %s18, 1
        %s172 = scalar_select %p171, %s18, 1
        %s173 = smul.addr %s172, 2
        %s174 = smul.addr %s173, 8
        %s175 = scalar_lea.vmem %s0, %s174
        %p176 = pneg %p39
        %p177 = pneg %p36
        %p178 = pneg %p60
        %p179 = pneg %p57
        %p180 = pneg %p81
        %p181 = pneg %p78
        %p182 = pneg %p102
        %p183 = pneg %p99
        %p184 = pneg %p128
        %p185 = pneg %p125
        %s186 = sand.u32 %s115, 1
        %s187 = scalar_lea.sflag [#allocation3], %s186
        %s188 = sand.u32 %s115, 1
        %s189 = smul.addr %s188, 16
        %s190 = scalar_lea.vmem [#allocation2], %s189
        %p191 = scmp.lt.s32.totalorder %s18, 1
        %s192 = scalar_select %p191, %s18, 1
        %s193 = smul.addr %s192, 2
        %s194 = smul.addr %s193, 8
        %s195 = scalar_lea.vmem %s0, %s194
        %v196 = vld [vmem:[%s195] sm:$0xff]
        %v197 = vld [vmem:[%s195 + $0x8] sm:$0xff]
        %v198 = vld [vmem:[%s1] sm:$0xff]
        %v199 = vld [vmem:[%s1 + $0x8] sm:$0xff]
        %v200 = vld [vmem:[%s1 + $0x10] sm:$0xff]
        %v201 = vld [vmem:[%s1 + $0x18] sm:$0xff]
        %v202 = vld [vmem:[%s1 + $0x20] sm:$0xff]
        %v203 = vld [vmem:[%s1 + $0x28] sm:$0xff]
        %v204 = vld [vmem:[%s1 + $0x30] sm:$0xff]
        %v205 = vld [vmem:[%s1 + $0x38] sm:$0xff]
        %v206 = vld [vmem:[%s1 + $0x40] sm:$0xff]
        %v207 = vld [vmem:[%s1 + $0x48] sm:$0xff]
        %v208 = vld [vmem:[%s1 + $0x50] sm:$0xff]
        %v209 = vld [vmem:[%s1 + $0x58] sm:$0xff]
        %v210 = vld [vmem:[%s1 + $0x60] sm:$0xff]
        %v211 = vld [vmem:[%s1 + $0x68] sm:$0xff]
        %v212 = vld [vmem:[%s1 + $0x70] sm:$0xff]
        %v213 = vld [vmem:[%s1 + $0x78] sm:$0xff]
        %v214 = vld [vmem:[%s1 + $0x80] sm:$0xff]
        %v215 = vld [vmem:[%s1 + $0x88] sm:$0xff]
        %v216 = vld [vmem:[%s1 + $0x90] sm:$0xff]
        %v217 = vld [vmem:[%s1 + $0x98] sm:$0xff]
        %v218 = vld [vmem:[%s1 + $0xa0] sm:$0xff]
        %v219 = vld [vmem:[%s1 + $0xa8] sm:$0xff]
        %v220 = vld [vmem:[%s1 + $0xb0] sm:$0xff]
        %v221 = vld [vmem:[%s1 + $0xb8] sm:$0xff]
        %v222 = vld [vmem:[%s1 + $0xc0] sm:$0xff]
        %v223 = vld [vmem:[%s1 + $0xc8] sm:$0xff]
        %v224 = vld [vmem:[%s1 + $0xd0] sm:$0xff]
        %v225 = vld [vmem:[%s1 + $0xd8] sm:$0xff]
        %v226 = vld [vmem:[%s1 + $0xe0] sm:$0xff]
        %v227 = vld [vmem:[%s1 + $0xe8] sm:$0xff]
        %v228 = vld [vmem:[%s1 + $0xf0] sm:$0xff]
        %v229 = vld [vmem:[%s1 + $0xf8] sm:$0xff]
        %v230 = vld [vmem:[%s1 + $0x100] sm:$0xff]
        %v231 = vld [vmem:[%s1 + $0x108] sm:$0xff]
        %v232 = vld [vmem:[%s1 + $0x110] sm:$0xff]
        %v233 = vld [vmem:[%s1 + $0x118] sm:$0xff]
        %v234 = vld [vmem:[%s1 + $0x120] sm:$0xff]
        %v235 = vld [vmem:[%s1 + $0x128] sm:$0xff]
        %v236 = vld [vmem:[%s1 + $0x130] sm:$0xff]
        %v237 = vld [vmem:[%s1 + $0x138] sm:$0xff]
        %v238 = vld [vmem:[%s1 + $0x140] sm:$0xff]
        %v239 = vld [vmem:[%s1 + $0x148] sm:$0xff]
        %v240 = vld [vmem:[%s1 + $0x150] sm:$0xff]
        %v241 = vld [vmem:[%s1 + $0x158] sm:$0xff]
        %v242 = vld [vmem:[%s1 + $0x160] sm:$0xff]
        %v243 = vld [vmem:[%s1 + $0x168] sm:$0xff]
        %v244 = vld [vmem:[%s1 + $0x170] sm:$0xff]
        %v245 = vld [vmem:[%s1 + $0x178] sm:$0xff]
        %vm246 = vcmask 64512
        %v248 = vsel %vm246, %v198, 0
        %v251 = vsel %vm246, %v199, 0
        %v254 = vsel %vm246, %v200, 0
        %v257 = vsel %vm246, %v201, 0
        %v260 = vsel %vm246, %v202, 0
        %v263 = vsel %vm246, %v203, 0
        %v266 = vsel %vm246, %v204, 0
        %v269 = vsel %vm246, %v205, 0
        %v272 = vsel %vm246, %v206, 0
        %v275 = vsel %vm246, %v207, 0
        %v278 = vsel %vm246, %v208, 0
        %v281 = vsel %vm246, %v209, 0
        %v284 = vsel %vm246, %v210, 0
        %v287 = vsel %vm246, %v211, 0
        %v290 = vsel %vm246, %v212, 0
        %v293 = vsel %vm246, %v213, 0
        %v296 = vsel %vm246, %v214, 0
        %v299 = vsel %vm246, %v215, 0
        %v302 = vsel %vm246, %v216, 0
        %v305 = vsel %vm246, %v217, 0
        %v308 = vsel %vm246, %v218, 0
        %v311 = vsel %vm246, %v219, 0
        %v314 = vsel %vm246, %v220, 0
        %v317 = vsel %vm246, %v221, 0
        %v320 = vsel %vm246, %v222, 0
        %v323 = vsel %vm246, %v223, 0
        %v326 = vsel %vm246, %v224, 0
        %v329 = vsel %vm246, %v225, 0
        %v332 = vsel %vm246, %v226, 0
        %v335 = vsel %vm246, %v227, 0
        %v338 = vsel %vm246, %v228, 0
        %v341 = vsel %vm246, %v229, 0
        %v344 = vsel %vm246, %v230, 0
        %v347 = vsel %vm246, %v231, 0
        %v350 = vsel %vm246, %v232, 0
        %v353 = vsel %vm246, %v233, 0
        %v356 = vsel %vm246, %v234, 0
        %v359 = vsel %vm246, %v235, 0
        %v362 = vsel %vm246, %v236, 0
        %v365 = vsel %vm246, %v237, 0
        %v368 = vsel %vm246, %v238, 0
        %v371 = vsel %vm246, %v239, 0
        %v374 = vsel %vm246, %v240, 0
        %v377 = vsel %vm246, %v241, 0
        %v380 = vsel %vm246, %v242, 0
        %v383 = vsel %vm246, %v243, 0
        %v386 = vsel %vm246, %v244, 0
        %v389 = vsel %vm246, %v245, 0
        %391 = vmatprep.subr.mxu0 %v197
        %392 = vmatpush1.msra.mxu0 %v196
        %393 = vmatprep.subr.mxu0 0.0
        %394 = vmatpush1.msra.mxu0 0.0
        %395 = vmatprep.subr.mxu0 0.0
        %396 = vmatpush1.msra.mxu0 0.0
        %397 = vmatprep.subr.mxu0 0.0
        %398 = vmatpush1.msra.mxu0 0.0
        %399 = vmatprep.subr.mxu0 0.0
        %400 = vmatpush1.msra.mxu0 0.0
        %401 = vmatprep.subr.mxu0 0.0
        %402 = vmatpush1.msra.mxu0 0.0
        %403 = vmatprep.subr.mxu0 0.0
        %404 = vmatpush1.msra.mxu0 0.0
        %405 = vmatprep.subr.mxu0 0.0
        %406 = vmatpush1.msra.mxu0 0.0
        %407 = vmatprep.subr.mxu0 0.0
        %408 = vmatpush1.msra.mxu0 0.0
        %409 = vmatprep.subr.mxu0 0.0
        %410 = vmatpush1.msra.mxu0 0.0
        %411 = vmatprep.subr.mxu0 0.0
        %412 = vmatpush1.msra.mxu0 0.0
        %413 = vmatprep.subr.mxu0 0.0
        %414 = vmatpush1.msra.mxu0 0.0
        %415 = vmatprep.subr.mxu0 0.0
        %416 = vmatpush1.msra.mxu0 0.0
        %417 = vmatprep.subr.mxu0 0.0
        %418 = vmatpush1.msra.mxu0 0.0
        %419 = vmatprep.subr.mxu0 0.0
        %420 = vmatpush1.msra.mxu0 0.0
        %421 = vmatprep.subr.mxu0 0.0
        %422 = vmatpush1.msra.mxu0 0.0
        %423 = vmatprep.subr.mxu0 0.0
        %424 = vmatpush1.msra.mxu0 0.0
        %425 = vmatprep.subr.mxu0 0.0
        %426 = vmatpush1.msra.mxu0 0.0
        %427 = vmatprep.subr.mxu0 0.0
        %428 = vmatpush1.msra.mxu0 0.0
        %429 = vmatprep.subr.mxu0 0.0
        %430 = vmatpush1.msra.mxu0 0.0
        %431 = vmatprep.subr.mxu0 0.0
        %432 = vmatpush1.msra.mxu0 0.0
        %433 = vmatprep.subr.mxu0 0.0
        %434 = vmatpush1.msra.mxu0 0.0
        %435 = vmatprep.subr.mxu0 0.0
        %436 = vmatpush1.msra.mxu0 0.0
        %437 = vmatprep.subr.mxu0 0.0
        %438 = vmatpush1.msra.mxu0 0.0
        %439 = vmatprep.subr.mxu0 0.0
        %440 = vmatpush1.msra.mxu0 0.0
        %441 = vmatprep.subr.mxu0 0.0
        %442 = vmatpush1.msra.mxu0 0.0
        %443 = vmatprep.subr.mxu0 0.0
        %444 = vmatpush1.msra.mxu0 0.0
        %445 = vmatprep.subr.mxu0 0.0
        %446 = vmatpush1.msra.mxu0 0.0
        %447 = vmatprep.subr.mxu0 0.0
        %448 = vmatpush1.msra.mxu0 0.0
        %449 = vmatprep.subr.mxu0 0.0
        %450 = vmatpush1.msra.mxu0 0.0
        %451 = vmatprep.subr.mxu0 0.0
        %452 = vmatpush1.msra.mxu0 0.0
        %453 = vmatprep.subr.mxu0 0.0
        %454 = vmatpush1.msra.mxu0 0.0
        %455 = vmatprep.mubr.f32.mxu0 0.0
        %456 = vmatmul.mubr.f32.gmra.mrb[0].mxu0 %v248
        %v457 = vpop.f32.mrb[0].mxu0
        %v458 = vadd.f32 0.0, %v457
        %v459 = vpop.f32.mrb[0].mxu0
        %v460 = vadd.f32 0.0, %v459
        %461 = vmatprep.mubr.f32.mxu0 0.0
        %462 = vmatmul.mubr.f32.gmra.mrb[0].mxu0 %v251
        %v463 = vpop.f32.mrb[0].mxu0
        %v464 = vadd.f32 0.0, %v463
        %v465 = vpop.f32.mrb[0].mxu0
        %v466 = vadd.f32 0.0, %v465
        %467 = vmatprep.mubr.f32.mxu0 0.0
        %468 = vmatmul.mubr.f32.gmra.mrb[0].mxu0 %v254
        %v469 = vpop.f32.mrb[0].mxu0
        %v470 = vadd.f32 0.0, %v469
        %v471 = vpop.f32.mrb[0].mxu0
        %v472 = vadd.f32 0.0, %v471
        %473 = vmatprep.mubr.f32.mxu0 0.0
        %474 = vmatmul.mubr.f32.gmra.mrb[0].mxu0 %v257
        %v475 = vpop.f32.mrb[0].mxu0
        %v476 = vadd.f32 0.0, %v475
        %v477 = vpop.f32.mrb[0].mxu0
        %v478 = vadd.f32 0.0, %v477
        %479 = vmatprep.mubr.f32.mxu0 0.0
        %480 = vmatmul.mubr.f32.gmra.mrb[0].mxu0 %v260
        %v481 = vpop.f32.mrb[0].mxu0
        %v482 = vadd.f32 0.0, %v481
        %v483 = vpop.f32.mrb[0].mxu0
        %v484 = vadd.f32 0.0, %v483
        %485 = vmatprep.mubr.f32.mxu0 0.0
        %486 = vmatmul.mubr.f32.gmra.mrb[0].mxu0 %v263
        %v487 = vpop.f32.mrb[0].mxu0
        %v488 = vadd.f32 0.0, %v487
        %v489 = vpop.f32.mrb[0].mxu0
        %v490 = vadd.f32 0.0, %v489
        %491 = vmatprep.mubr.f32.mxu0 0.0
        %492 = vmatmul.mubr.f32.gmra.mrb[0].mxu0 %v266
        %v493 = vpop.f32.mrb[0].mxu0
        %v494 = vadd.f32 0.0, %v493
        %v495 = vpop.f32.mrb[0].mxu0
        %v496 = vadd.f32 0.0, %v495
        %497 = vmatprep.mubr.f32.mxu0 0.0
        %498 = vmatmul.mubr.f32.gmra.mrb[0].mxu0 %v269
        %v499 = vpop.f32.mrb[0].mxu0
        %v500 = vadd.f32 0.0, %v499
        %v501 = vpop.f32.mrb[0].mxu0
        %v502 = vadd.f32 0.0, %v501
        %503 = vmatprep.mubr.f32.mxu0 0.0
        %504 = vmatmul.mubr.f32.gmra.mrb[0].mxu0 %v272
        %v505 = vpop.f32.mrb[0].mxu0
        %v506 = vadd.f32 0.0, %v505
        %v507 = vpop.f32.mrb[0].mxu0
        %v508 = vadd.f32 0.0, %v507
        %509 = vmatprep.mubr.f32.mxu0 0.0
        %510 = vmatmul.mubr.f32.gmra.mrb[0].mxu0 %v275
        %v511 = vpop.f32.mrb[0].mxu0
        %v512 = vadd.f32 0.0, %v511
        %v513 = vpop.f32.mrb[0].mxu0
        %v514 = vadd.f32 0.0, %v513
        %515 = vmatprep.mubr.f32.mxu0 0.0
        %516 = vmatmul.mubr.f32.gmra.mrb[0].mxu0 %v278
        %v517 = vpop.f32.mrb[0].mxu0
        %v518 = vadd.f32 0.0, %v517
        %v519 = vpop.f32.mrb[0].mxu0
        %v520 = vadd.f32 0.0, %v519
        %521 = vmatprep.mubr.f32.mxu0 0.0
        %522 = vmatmul.mubr.f32.gmra.mrb[0].mxu0 %v281
        %v523 = vpop.f32.mrb[0].mxu0
        %v524 = vadd.f32 0.0, %v523
        %v525 = vpop.f32.mrb[0].mxu0
        %v526 = vadd.f32 0.0, %v525
        %527 = vmatprep.mubr.f32.mxu0 0.0
        %528 = vmatmul.mubr.f32.gmra.mrb[0].mxu0 %v284
        %v529 = vpop.f32.mrb[0].mxu0
        %v530 = vadd.f32 0.0, %v529
        %v531 = vpop.f32.mrb[0].mxu0
        %v532 = vadd.f32 0.0, %v531
        %533 = vmatprep.mubr.f32.mxu0 0.0
        %534 = vmatmul.mubr.f32.gmra.mrb[0].mxu0 %v287
        %v535 = vpop.f32.mrb[0].mxu0
        %v536 = vadd.f32 0.0, %v535
        %v537 = vpop.f32.mrb[0].mxu0
        %v538 = vadd.f32 0.0, %v537
        %539 = vmatprep.mubr.f32.mxu0 0.0
        %540 = vmatmul.mubr.f32.gmra.mrb[0].mxu0 %v290
        %v541 = vpop.f32.mrb[0].mxu0
        %v542 = vadd.f32 0.0, %v541
        %v543 = vpop.f32.mrb[0].mxu0
        %v544 = vadd.f32 0.0, %v543
        %545 = vmatprep.mubr.f32.mxu0 0.0
        %546 = vmatmul.mubr.f32.gmra.mrb[0].mxu0 %v293
        %v547 = vpop.f32.mrb[0].mxu0
        %v548 = vadd.f32 0.0, %v547
        %v549 = vpop.f32.mrb[0].mxu0
        %v550 = vadd.f32 0.0, %v549
        %551 = vmatprep.mubr.f32.mxu0 0.0
        %552 = vmatmul.mubr.f32.gmra.mrb[0].mxu0 %v296
        %v553 = vpop.f32.mrb[0].mxu0
        %v554 = vadd.f32 0.0, %v553
        %v555 = vpop.f32.mrb[0].mxu0
        %v556 = vadd.f32 0.0, %v555
        %557 = vmatprep.mubr.f32.mxu0 0.0
        %558 = vmatmul.mubr.f32.gmra.mrb[0].mxu0 %v299
        %v559 = vpop.f32.mrb[0].mxu0
        %v560 = vadd.f32 0.0, %v559
        %v561 = vpop.f32.mrb[0].mxu0
        %v562 = vadd.f32 0.0, %v561
        %563 = vmatprep.mubr.f32.mxu0 0.0
        %564 = vmatmul.mubr.f32.gmra.mrb[0].mxu0 %v302
        %v565 = vpop.f32.mrb[0].mxu0
        %v566 = vadd.f32 0.0, %v565
        %v567 = vpop.f32.mrb[0].mxu0
        %v568 = vadd.f32 0.0, %v567
        %569 = vmatprep.mubr.f32.mxu0 0.0
        %570 = vmatmul.mubr.f32.gmra.mrb[0].mxu0 %v305
        %v571 = vpop.f32.mrb[0].mxu0
        %v572 = vadd.f32 0.0, %v571
        %v573 = vpop.f32.mrb[0].mxu0
        %v574 = vadd.f32 0.0, %v573
        %575 = vmatprep.mubr.f32.mxu0 0.0
        %576 = vmatmul.mubr.f32.gmra.mrb[0].mxu0 %v308
        %v577 = vpop.f32.mrb[0].mxu0
        %v578 = vadd.f32 0.0, %v577
        %v579 = vpop.f32.mrb[0].mxu0
        %v580 = vadd.f32 0.0, %v579
        %581 = vmatprep.mubr.f32.mxu0 0.0
        %582 = vmatmul.mubr.f32.gmra.mrb[0].mxu0 %v311
        %v583 = vpop.f32.mrb[0].mxu0
        %v584 = vadd.f32 0.0, %v583
        %v585 = vpop.f32.mrb[0].mxu0
        %v586 = vadd.f32 0.0, %v585
        %587 = vmatprep.mubr.f32.mxu0 0.0
        %588 = vmatmul.mubr.f32.gmra.mrb[0].mxu0 %v314
        %v589 = vpop.f32.mrb[0].mxu0
        %v590 = vadd.f32 0.0, %v589
        %v591 = vpop.f32.mrb[0].mxu0
        %v592 = vadd.f32 0.0, %v591
        %593 = vmatprep.mubr.f32.mxu0 0.0
        %594 = vmatmul.mubr.f32.gmra.mrb[0].mxu0 %v317
        %v595 = vpop.f32.mrb[0].mxu0
        %v596 = vadd.f32 0.0, %v595
        %v597 = vpop.f32.mrb[0].mxu0
        %v598 = vadd.f32 0.0, %v597
        %599 = vmatprep.mubr.f32.mxu0 0.0
        %600 = vmatmul.mubr.f32.gmra.mrb[0].mxu0 %v320
        %v601 = vpop.f32.mrb[0].mxu0
        %v602 = vadd.f32 0.0, %v601
        %v603 = vpop.f32.mrb[0].mxu0
        %v604 = vadd.f32 0.0, %v603
        %605 = vmatprep.mubr.f32.mxu0 0.0
        %606 = vmatmul.mubr.f32.gmra.mrb[0].mxu0 %v323
        %v607 = vpop.f32.mrb[0].mxu0
        %v608 = vadd.f32 0.0, %v607
        %v609 = vpop.f32.mrb[0].mxu0
        %v610 = vadd.f32 0.0, %v609
        %611 = vmatprep.mubr.f32.mxu0 0.0
        %612 = vmatmul.mubr.f32.gmra.mrb[0].mxu0 %v326
        %v613 = vpop.f32.mrb[0].mxu0
        %v614 = vadd.f32 0.0, %v613
        %v615 = vpop.f32.mrb[0].mxu0
        %v616 = vadd.f32 0.0, %v615
        %617 = vmatprep.mubr.f32.mxu0 0.0
        %618 = vmatmul.mubr.f32.gmra.mrb[0].mxu0 %v329
        %v619 = vpop.f32.mrb[0].mxu0
        %v620 = vadd.f32 0.0, %v619
        %v621 = vpop.f32.mrb[0].mxu0
        %v622 = vadd.f32 0.0, %v621
        %623 = vmatprep.mubr.f32.mxu0 0.0
        %624 = vmatmul.mubr.f32.gmra.mrb[0].mxu0 %v332
        %v625 = vpop.f32.mrb[0].mxu0
        %v626 = vadd.f32 0.0, %v625
        %v627 = vpop.f32.mrb[0].mxu0
        %v628 = vadd.f32 0.0, %v627
        %629 = vmatprep.mubr.f32.mxu0 0.0
        %630 = vmatmul.mubr.f32.gmra.mrb[0].mxu0 %v335
        %v631 = vpop.f32.mrb[0].mxu0
        %v632 = vadd.f32 0.0, %v631
        %v633 = vpop.f32.mrb[0].mxu0
        %v634 = vadd.f32 0.0, %v633
        %635 = vmatprep.mubr.f32.mxu0 0.0
        %636 = vmatmul.mubr.f32.gmra.mrb[0].mxu0 %v338
        %v637 = vpop.f32.mrb[0].mxu0
        %v638 = vadd.f32 0.0, %v637
        %v639 = vpop.f32.mrb[0].mxu0
        %v640 = vadd.f32 0.0, %v639
        %641 = vmatprep.mubr.f32.mxu0 0.0
        %642 = vmatmul.mubr.f32.gmra.mrb[0].mxu0 %v341
        %v643 = vpop.f32.mrb[0].mxu0
        %v644 = vadd.f32 0.0, %v643
        %v645 = vpop.f32.mrb[0].mxu0
        %v646 = vadd.f32 0.0, %v645
        %647 = vmatprep.mubr.f32.mxu0 0.0
        %648 = vmatmul.mubr.f32.gmra.mrb[0].mxu0 %v344
        %v649 = vpop.f32.mrb[0].mxu0
        %v650 = vadd.f32 0.0, %v649
        %v651 = vpop.f32.mrb[0].mxu0
        %v652 = vadd.f32 0.0, %v651
        %653 = vmatprep.mubr.f32.mxu0 0.0
        %654 = vmatmul.mubr.f32.gmra.mrb[0].mxu0 %v347
        %v655 = vpop.f32.mrb[0].mxu0
        %v656 = vadd.f32 0.0, %v655
        %v657 = vpop.f32.mrb[0].mxu0
        %v658 = vadd.f32 0.0, %v657
        %659 = vmatprep.mubr.f32.mxu0 0.0
        %660 = vmatmul.mubr.f32.gmra.mrb[0].mxu0 %v350
        %v661 = vpop.f32.mrb[0].mxu0
        %v662 = vadd.f32 0.0, %v661
        %v663 = vpop.f32.mrb[0].mxu0
        %v664 = vadd.f32 0.0, %v663
        %665 = vmatprep.mubr.f32.mxu0 0.0
        %666 = vmatmul.mubr.f32.gmra.mrb[0].mxu0 %v353
        %v667 = vpop.f32.mrb[0].mxu0
        %v668 = vadd.f32 0.0, %v667
        %v669 = vpop.f32.mrb[0].mxu0
        %v670 = vadd.f32 0.0, %v669
        %671 = vmatprep.mubr.f32.mxu0 0.0
        %672 = vmatmul.mubr.f32.gmra.mrb[0].mxu0 %v356
        %v673 = vpop.f32.mrb[0].mxu0
        %v674 = vadd.f32 0.0, %v673
        %v675 = vpop.f32.mrb[0].mxu0
        %v676 = vadd.f32 0.0, %v675
        %677 = vmatprep.mubr.f32.mxu0 0.0
        %678 = vmatmul.mubr.f32.gmra.mrb[0].mxu0 %v359
        %v679 = vpop.f32.mrb[0].mxu0
        %v680 = vadd.f32 0.0, %v679
        %v681 = vpop.f32.mrb[0].mxu0
        %v682 = vadd.f32 0.0, %v681
        %683 = vmatprep.mubr.f32.mxu0 0.0
        %684 = vmatmul.mubr.f32.gmra.mrb[0].mxu0 %v362
        %v685 = vpop.f32.mrb[0].mxu0
        %v686 = vadd.f32 0.0, %v685
        %v687 = vpop.f32.mrb[0].mxu0
        %v688 = vadd.f32 0.0, %v687
        %689 = vmatprep.mubr.f32.mxu0 0.0
        %690 = vmatmul.mubr.f32.gmra.mrb[0].mxu0 %v365
        %v691 = vpop.f32.mrb[0].mxu0
        %v692 = vadd.f32 0.0, %v691
        %v693 = vpop.f32.mrb[0].mxu0
        %v694 = vadd.f32 0.0, %v693
        %695 = vmatprep.mubr.f32.mxu0 0.0
        %696 = vmatmul.mubr.f32.gmra.mrb[0].mxu0 %v368
        %v697 = vpop.f32.mrb[0].mxu0
        %v698 = vadd.f32 0.0, %v697
        %v699 = vpop.f32.mrb[0].mxu0
        %v700 = vadd.f32 0.0, %v699
        %701 = vmatprep.mubr.f32.mxu0 0.0
        %702 = vmatmul.mubr.f32.gmra.mrb[0].mxu0 %v371
        %v703 = vpop.f32.mrb[0].mxu0
        %v704 = vadd.f32 0.0, %v703
        %v705 = vpop.f32.mrb[0].mxu0
        %v706 = vadd.f32 0.0, %v705
        %707 = vmatprep.mubr.f32.mxu0 0.0
        %708 = vmatmul.mubr.f32.gmra.mrb[0].mxu0 %v374
        %v709 = vpop.f32.mrb[0].mxu0
        %v710 = vadd.f32 0.0, %v709
        %v711 = vpop.f32.mrb[0].mxu0
        %v712 = vadd.f32 0.0, %v711
        %713 = vmatprep.mubr.f32.mxu0 0.0
        %714 = vmatmul.mubr.f32.gmra.mrb[0].mxu0 %v377
        %v715 = vpop.f32.mrb[0].mxu0
        %v716 = vadd.f32 0.0, %v715
        %v717 = vpop.f32.mrb[0].mxu0
        %v718 = vadd.f32 0.0, %v717
        %719 = vmatprep.mubr.f32.mxu0 0.0
        %720 = vmatmul.mubr.f32.gmra.mrb[0].mxu0 %v380
        %v721 = vpop.f32.mrb[0].mxu0
        %v722 = vadd.f32 0.0, %v721
        %v723 = vpop.f32.mrb[0].mxu0
        %v724 = vadd.f32 0.0, %v723
        %725 = vmatprep.mubr.f32.mxu0 0.0
        %726 = vmatmul.mubr.f32.gmra.mrb[0].mxu0 %v383
        %v727 = vpop.f32.mrb[0].mxu0
        %v728 = vadd.f32 0.0, %v727
        %v729 = vpop.f32.mrb[0].mxu0
        %v730 = vadd.f32 0.0, %v729
        %731 = vmatprep.mubr.f32.mxu0 0.0
        %732 = vmatmul.mubr.f32.gmra.mrb[0].mxu0 %v386
        %v733 = vpop.f32.mrb[0].mxu0
        %v734 = vadd.f32 0.0, %v733
        %v735 = vpop.f32.mrb[0].mxu0
        %v736 = vadd.f32 0.0, %v735
        %737 = vmatprep.mubr.f32.mxu0 0.0
        %738 = vmatmul.mubr.f32.gmra.mrb[0].mxu0 %v389
        %v739 = vpop.f32.mrb[0].mxu0
        %v740 = vadd.f32 0.0, %v739
        %v741 = vpop.f32.mrb[0].mxu0
        %v742 = vadd.f32 0.0, %v741
        %743 = vdwg.mxu0
        %v744 = vmax.f32 %v554, %v556
        %745 = vmax.xlane.f32.xlu0 %v744
        %v746 = vpop.xlane.xlu0 %745
        %v747 = vmax.f32 %v560, %v562
        %748 = vmax.xlane.f32.xlu0 %v747
        %v749 = vpop.xlane.xlu0 %748
        %v750 = vmax.f32 %v566, %v568
        %751 = vmax.xlane.f32.xlu0 %v750
        %v752 = vpop.xlane.xlu0 %751
        %v753 = vmax.f32 %v572, %v574
        %754 = vmax.xlane.f32.xlu0 %v753
        %v755 = vpop.xlane.xlu0 %754
        %v756 = vmax.f32 %v578, %v580
        %757 = vmax.xlane.f32.xlu0 %v756
        %v758 = vpop.xlane.xlu0 %757
        %v759 = vmax.f32 %v584, %v586
        %760 = vmax.xlane.f32.xlu0 %v759
        %v761 = vpop.xlane.xlu0 %760
        %v762 = vmax.f32 %v590, %v592
        %763 = vmax.xlane.f32.xlu0 %v762
        %v764 = vpop.xlane.xlu0 %763
        %v765 = vmax.f32 %v596, %v598
        %766 = vmax.xlane.f32.xlu0 %v765
        %v767 = vpop.xlane.xlu0 %766
        %v768 = vmax.f32 %v602, %v604
        %769 = vmax.xlane.f32.xlu0 %v768
        %v770 = vpop.xlane.xlu0 %769
        %v771 = vmax.f32 %v608, %v610
        %772 = vmax.xlane.f32.xlu0 %v771
        %v773 = vpop.xlane.xlu0 %772
        %v774 = vmax.f32 %v614, %v616
        %775 = vmax.xlane.f32.xlu0 %v774
        %v776 = vpop.xlane.xlu0 %775
        %v777 = vmax.f32 %v620, %v622
        %778 = vmax.xlane.f32.xlu0 %v777
        %v779 = vpop.xlane.xlu0 %778
        %v780 = vmax.f32 %v626, %v628
        %781 = vmax.xlane.f32.xlu0 %v780
        %v782 = vpop.xlane.xlu0 %781
        %v783 = vmax.f32 %v632, %v634
        %784 = vmax.xlane.f32.xlu0 %v783
        %v785 = vpop.xlane.xlu0 %784
        %v786 = vmax.f32 %v638, %v640
        %787 = vmax.xlane.f32.xlu0 %v786
        %v788 = vpop.xlane.xlu0 %787
        %v789 = vmax.f32 %v644, %v646
        %790 = vmax.xlane.f32.xlu0 %v789
        %v791 = vpop.xlane.xlu0 %790
        %v792 = vsub.f32 %v554, %v746
        %v793 = vsub.f32 %v556, %v746
        %v794 = vsub.f32 %v560, %v749
        %v795 = vsub.f32 %v562, %v749
        %v796 = vsub.f32 %v566, %v752
        %v797 = vsub.f32 %v568, %v752
        %v798 = vsub.f32 %v572, %v755
        %v799 = vsub.f32 %v574, %v755
        %v800 = vsub.f32 %v578, %v758
        %v801 = vsub.f32 %v580, %v758
        %v802 = vsub.f32 %v584, %v761
        %v803 = vsub.f32 %v586, %v761
        %v804 = vsub.f32 %v590, %v764
        %v805 = vsub.f32 %v592, %v764
        %v806 = vsub.f32 %v596, %v767
        %v807 = vsub.f32 %v598, %v767
        %v808 = vsub.f32 %v602, %v770
        %v809 = vsub.f32 %v604, %v770
        %v810 = vsub.f32 %v608, %v773
        %v811 = vsub.f32 %v610, %v773
        %v812 = vsub.f32 %v614, %v776
        %v813 = vsub.f32 %v616, %v776
        %v814 = vsub.f32 %v620, %v779
        %v815 = vsub.f32 %v622, %v779
        %v816 = vsub.f32 %v626, %v782
        %v817 = vsub.f32 %v628, %v782
        %v818 = vsub.f32 %v632, %v785
        %v819 = vsub.f32 %v634, %v785
        %v820 = vsub.f32 %v638, %v788
        %v821 = vsub.f32 %v640, %v788
        %v822 = vsub.f32 %v644, %v791
        %v823 = vsub.f32 %v646, %v791
        %v824 = vmul.f32 %v792, 1.442695
        %v825 = vpow.pop %v824
        %v826 = vmul.f32 %v793, 1.442695
        %v827 = vpow.pop %v826
        %v828 = vmul.f32 %v794, 1.442695
        %v829 = vpow.pop %v828
        %v830 = vmul.f32 %v795, 1.442695
        %v831 = vpow.pop %v830
        %v832 = vmul.f32 %v796, 1.442695
        %v833 = vpow.pop %v832
        %v834 = vmul.f32 %v797, 1.442695
        %v835 = vpow.pop %v834
        %v836 = vmul.f32 %v798, 1.442695
        %v837 = vpow.pop %v836
        %v838 = vmul.f32 %v799, 1.442695
        %v839 = vpow.pop %v838
        %v840 = vmul.f32 %v800, 1.442695
        %v841 = vpow.pop %v840
        %v842 = vmul.f32 %v801, 1.442695
        %v843 = vpow.pop %v842
        %v844 = vmul.f32 %v802, 1.442695
        %v845 = vpow.pop %v844
        %v846 = vmul.f32 %v803, 1.442695
        %v847 = vpow.pop %v846
        %v848 = vmul.f32 %v804, 1.442695
        %v849 = vpow.pop %v848
        %v850 = vmul.f32 %v805, 1.442695
        %v851 = vpow.pop %v850
        %v852 = vmul.f32 %v806, 1.442695
        %v853 = vpow.pop %v852
        %v854 = vmul.f32 %v807, 1.442695
        %v855 = vpow.pop %v854
        %v856 = vmul.f32 %v808, 1.442695
        %v857 = vpow.pop %v856
        %v858 = vmul.f32 %v809, 1.442695
        %v859 = vpow.pop %v858
        %v860 = vmul.f32 %v810, 1.442695
        %v861 = vpow.pop %v860
        %v862 = vmul.f32 %v811, 1.442695
        %v863 = vpow.pop %v862
        %v864 = vmul.f32 %v812, 1.442695
        %v865 = vpow.pop %v864
        %v866 = vmul.f32 %v813, 1.442695
        %v867 = vpow.pop %v866
        %v868 = vmul.f32 %v814, 1.442695
        %v869 = vpow.pop %v868
        %v870 = vmul.f32 %v815, 1.442695
        %v871 = vpow.pop %v870
        %v872 = vmul.f32 %v816, 1.442695
        %v873 = vpow.pop %v872
        %v874 = vmul.f32 %v817, 1.442695
        %v875 = vpow.pop %v874
        %v876 = vmul.f32 %v818, 1.442695
        %v877 = vpow.pop %v876
        %v878 = vmul.f32 %v819, 1.442695
        %v879 = vpow.pop %v878
        %v880 = vmul.f32 %v820, 1.442695
        %v881 = vpow.pop %v880
        %v882 = vmul.f32 %v821, 1.442695
        %v883 = vpow.pop %v882
        %v884 = vmul.f32 %v822, 1.442695
        %v885 = vpow.pop %v884
        %v886 = vmul.f32 %v823, 1.442695
        %v887 = vpow.pop %v886
        %v888 = vadd.f32 %v825, %v827
        %889 = vadd.xlane.f32.xlu0 %v888
        %v890 = vpop.xlane.xlu0 %889
        %v891 = vadd.f32 %v829, %v831
        %892 = vadd.xlane.f32.xlu0 %v891
        %v893 = vpop.xlane.xlu0 %892
        %v894 = vadd.f32 %v833, %v835
        %895 = vadd.xlane.f32.xlu0 %v894
        %v896 = vpop.xlane.xlu0 %895
        %v897 = vadd.f32 %v837, %v839
        %898 = vadd.xlane.f32.xlu0 %v897
        %v899 = vpop.xlane.xlu0 %898
        %v900 = vadd.f32 %v841, %v843
        %901 = vadd.xlane.f32.xlu0 %v900
        %v902 = vpop.xlane.xlu0 %901
        %v903 = vadd.f32 %v845, %v847
        %904 = vadd.xlane.f32.xlu0 %v903
        %v905 = vpop.xlane.xlu0 %904
        %v906 = vadd.f32 %v849, %v851
        %907 = vadd.xlane.f32.xlu0 %v906
        %v908 = vpop.xlane.xlu0 %907
        %v909 = vadd.f32 %v853, %v855
        %910 = vadd.xlane.f32.xlu0 %v909
        %v911 = vpop.xlane.xlu0 %910
        %v912 = vadd.f32 %v857, %v859
        %913 = vadd.xlane.f32.xlu0 %v912
        %v914 = vpop.xlane.xlu0 %913
        %v915 = vadd.f32 %v861, %v863
        %916 = vadd.xlane.f32.xlu0 %v915
        %v917 = vpop.xlane.xlu0 %916
        %v918 = vadd.f32 %v865, %v867
        %919 = vadd.xlane.f32.xlu0 %v918
        %v920 = vpop.xlane.xlu0 %919
        %v921 = vadd.f32 %v869, %v871
        %922 = vadd.xlane.f32.xlu0 %v921
        %v923 = vpop.xlane.xlu0 %922
        %v924 = vadd.f32 %v873, %v875
        %925 = vadd.xlane.f32.xlu0 %v924
        %v926 = vpop.xlane.xlu0 %925
        %v927 = vadd.f32 %v877, %v879
        %928 = vadd.xlane.f32.xlu0 %v927
        %v929 = vpop.xlane.xlu0 %928
        %v930 = vadd.f32 %v881, %v883
        %931 = vadd.xlane.f32.xlu0 %v930
        %v932 = vpop.xlane.xlu0 %931
        %v933 = vadd.f32 %v885, %v887
        %934 = vadd.xlane.f32.xlu0 %v933
        %v935 = vpop.xlane.xlu0 %934
        %v936 = vrcp.pop %v890
        %v937 = vrcp.pop %v893
        %v938 = vrcp.pop %v896
        %v939 = vrcp.pop %v899
        %v940 = vrcp.pop %v902
        %v941 = vrcp.pop %v905
        %v942 = vrcp.pop %v908
        %v943 = vrcp.pop %v911
        %v944 = vrcp.pop %v914
        %v945 = vrcp.pop %v917
        %v946 = vrcp.pop %v920
        %v947 = vrcp.pop %v923
        %v948 = vrcp.pop %v926
        %v949 = vrcp.pop %v929
        %v950 = vrcp.pop %v932
        %v951 = vrcp.pop %v935
        %v952 = vmul.f32 %v825, %v936
        %v953 = vmul.f32 %v827, %v936
        %v954 = vmul.f32 %v829, %v937
        %v955 = vmul.f32 %v831, %v937
        %v956 = vmul.f32 %v833, %v938
        %v957 = vmul.f32 %v835, %v938
        %v958 = vmul.f32 %v837, %v939
        %v959 = vmul.f32 %v839, %v939
        %v960 = vmul.f32 %v841, %v940
        %v961 = vmul.f32 %v843, %v940
        %v962 = vmul.f32 %v845, %v941
        %v963 = vmul.f32 %v847, %v941
        %v964 = vmul.f32 %v849, %v942
        %v965 = vmul.f32 %v851, %v942
        %v966 = vmul.f32 %v853, %v943
        %v967 = vmul.f32 %v855, %v943
        %v968 = vmul.f32 %v857, %v944
        %v969 = vmul.f32 %v859, %v944
        %v970 = vmul.f32 %v861, %v945
        %v971 = vmul.f32 %v863, %v945
        %v972 = vmul.f32 %v865, %v946
        %v973 = vmul.f32 %v867, %v946
        %v974 = vmul.f32 %v869, %v947
        %v975 = vmul.f32 %v871, %v947
        %v976 = vmul.f32 %v873, %v948
        %v977 = vmul.f32 %v875, %v948
        %v978 = vmul.f32 %v877, %v949
        %v979 = vmul.f32 %v879, %v949
        %v980 = vmul.f32 %v881, %v950
        %v981 = vmul.f32 %v883, %v950
        %v982 = vmul.f32 %v885, %v951
        %v983 = vmul.f32 %v887, %v951
        %984 = vmatprep.subr.mxu0 %v953
        %985 = vmatpush1.xpose.msra.mxu0 %v952
        %986 = vmatprep.subr.mxu0 %v955
        %987 = vmatpush1.xpose.msra.mxu0 %v954
        %988 = vmatprep.subr.mxu0 %v957
        %989 = vmatpush1.xpose.msra.mxu0 %v956
        %990 = vmatprep.subr.mxu0 %v959
        %991 = vmatpush1.xpose.msra.mxu0 %v958
        %992 = vmatprep.subr.mxu0 0.0
        %993 = vmatpush1.xpose.msra.mxu0 0.0
        %994 = vmatprep.subr.mxu0 0.0
        %995 = vmatpush1.xpose.msra.mxu0 0.0
        %996 = vmatprep.subr.mxu0 0.0
        %997 = vmatpush1.xpose.msra.mxu0 0.0
        %998 = vmatprep.subr.mxu0 0.0
        %999 = vmatpush1.xpose.msra.mxu0 0.0
        %1000 = vmatprep.subr.mxu0 0.0
        %1001 = vmatpush1.xpose.msra.mxu0 0.0
        %1002 = vmatprep.subr.mxu0 0.0
        %1003 = vmatpush1.xpose.msra.mxu0 0.0
        %1004 = vmatprep.subr.mxu0 0.0
        %1005 = vmatpush1.xpose.msra.mxu0 0.0
        %1006 = vmatprep.subr.mxu0 0.0
        %1007 = vmatpush1.xpose.msra.mxu0 0.0
        %1008 = vmatprep.subr.mxu0 0.0
        %1009 = vmatpush1.xpose.msra.mxu0 0.0
        %1010 = vmatprep.subr.mxu0 0.0
        %1011 = vmatpush1.xpose.msra.mxu0 0.0
        %1012 = vmatprep.subr.mxu0 0.0
        %1013 = vmatpush1.xpose.msra.mxu0 0.0
        %1014 = vmatprep.subr.mxu0 0.0
        %1015 = vmatpush1.xpose.msra.mxu0 0.0
        %1016 = vmatprep.subr.mxu0 0.0
        %1017 = vmatpush1.xpose.msra.mxu0 0.0
        %1018 = vmatprep.subr.mxu0 0.0
        %1019 = vmatpush1.xpose.msra.mxu0 0.0
        %1020 = vmatprep.subr.mxu0 0.0
        %1021 = vmatpush1.xpose.msra.mxu0 0.0
        %1022 = vmatprep.subr.mxu0 0.0
        %1023 = vmatpush1.xpose.msra.mxu0 0.0
        %1024 = vmatprep.subr.mxu0 0.0
        %1025 = vmatpush1.xpose.msra.mxu0 0.0
        %1026 = vmatprep.subr.mxu0 0.0
        %1027 = vmatpush1.xpose.msra.mxu0 0.0
        %1028 = vmatprep.subr.mxu0 0.0
        %1029 = vmatpush1.xpose.msra.mxu0 0.0
        %1030 = vmatprep.subr.mxu0 0.0
        %1031 = vmatpush1.xpose.msra.mxu0 0.0
        %1032 = vmatprep.subr.mxu0 0.0
        %1033 = vmatpush1.xpose.msra.mxu0 0.0
        %1034 = vmatprep.subr.mxu0 0.0
        %1035 = vmatpush1.xpose.msra.mxu0 0.0
        %1036 = vmatprep.subr.mxu0 0.0
        %1037 = vmatpush1.xpose.msra.mxu0 0.0
        %1038 = vmatprep.subr.mxu0 0.0
        %1039 = vmatpush1.xpose.msra.mxu0 0.0
        %1040 = vmatprep.subr.mxu0 0.0
        %1041 = vmatpush1.xpose.msra.mxu0 0.0
        %1042 = vmatprep.subr.mxu0 0.0
        %1043 = vmatpush1.xpose.msra.mxu0 0.0
        %1044 = vmatprep.subr.mxu0 0.0
        %1045 = vmatpush1.xpose.msra.mxu0 0.0
        %1046 = vmatprep.subr.mxu0 0.0
        %1047 = vmatpush1.xpose.msra.mxu0 0.0
        %1048 = vmatprep.mubr.f32.mxu0 %v652
        %1049 = vmatmul.mubr.f32.gmra.mrb[0].mxu0 %v650
        %v1050 = vpop.f32.mrb[0].mxu0
        %v1051 = vadd.f32 0.0, %v1050
        %v1052 = vpop.f32.mrb[0].mxu0
        %1053 = vmatprep.mubr.f32.mxu0 %v658
        %1054 = vmatmul.mubr.f32.gmra.mrb[0].mxu0 %v656
        %v1055 = vpop.f32.mrb[0].mxu0
        %v1056 = vadd.f32 0.0, %v1055
        %v1057 = vpop.f32.mrb[0].mxu0
        %1058 = vmatprep.mubr.f32.mxu0 %v664
        %1059 = vmatmul.mubr.f32.gmra.mrb[0].mxu0 %v662
        %v1060 = vpop.f32.mrb[0].mxu0
        %v1061 = vadd.f32 0.0, %v1060
        %v1062 = vpop.f32.mrb[0].mxu0
        %1063 = vmatprep.mubr.f32.mxu0 %v670
        %1064 = vmatmul.mubr.f32.gmra.mrb[0].mxu0 %v668
        %v1065 = vpop.f32.mrb[0].mxu0
        %v1066 = vadd.f32 0.0, %v1065
        %v1067 = vpop.f32.mrb[0].mxu0
        %1068 = vdwg.mxu0
        %1069 = vmatprep.subr.mxu0 %v961
        %1070 = vmatpush1.xpose.msra.mxu0 %v960
        %1071 = vmatprep.subr.mxu0 %v963
        %1072 = vmatpush1.xpose.msra.mxu0 %v962
        %1073 = vmatprep.subr.mxu0 %v965
        %1074 = vmatpush1.xpose.msra.mxu0 %v964
        %1075 = vmatprep.subr.mxu0 %v967
        %1076 = vmatpush1.xpose.msra.mxu0 %v966
        %1077 = vmatprep.subr.mxu0 0.0
        %1078 = vmatpush1.xpose.msra.mxu0 0.0
        %1079 = vmatprep.subr.mxu0 0.0
        %1080 = vmatpush1.xpose.msra.mxu0 0.0
        %1081 = vmatprep.subr.mxu0 0.0
        %1082 = vmatpush1.xpose.msra.mxu0 0.0
        %1083 = vmatprep.subr.mxu0 0.0
        %1084 = vmatpush1.xpose.msra.mxu0 0.0
        %1085 = vmatprep.subr.mxu0 0.0
        %1086 = vmatpush1.xpose.msra.mxu0 0.0
        %1087 = vmatprep.subr.mxu0 0.0
        %1088 = vmatpush1.xpose.msra.mxu0 0.0
        %1089 = vmatprep.subr.mxu0 0.0
        %1090 = vmatpush1.xpose.msra.mxu0 0.0
        %1091 = vmatprep.subr.mxu0 0.0
        %1092 = vmatpush1.xpose.msra.mxu0 0.0
        %1093 = vmatprep.subr.mxu0 0.0
        %1094 = vmatpush1.xpose.msra.mxu0 0.0
        %1095 = vmatprep.subr.mxu0 0.0
        %1096 = vmatpush1.xpose.msra.mxu0 0.0
        %1097 = vmatprep.subr.mxu0 0.0
        %1098 = vmatpush1.xpose.msra.mxu0 0.0
        %1099 = vmatprep.subr.mxu0 0.0
        %1100 = vmatpush1.xpose.msra.mxu0 0.0
        %1101 = vmatprep.subr.mxu0 0.0
        %1102 = vmatpush1.xpose.msra.mxu0 0.0
        %1103 = vmatprep.subr.mxu0 0.0
        %1104 = vmatpush1.xpose.msra.mxu0 0.0
        %1105 = vmatprep.subr.mxu0 0.0
        %1106 = vmatpush1.xpose.msra.mxu0 0.0
        %1107 = vmatprep.subr.mxu0 0.0
        %1108 = vmatpush1.xpose.msra.mxu0 0.0
        %1109 = vmatprep.subr.mxu0 0.0
        %1110 = vmatpush1.xpose.msra.mxu0 0.0
        %1111 = vmatprep.subr.mxu0 0.0
        %1112 = vmatpush1.xpose.msra.mxu0 0.0
        %1113 = vmatprep.subr.mxu0 0.0
        %1114 = vmatpush1.xpose.msra.mxu0 0.0
        %1115 = vmatprep.subr.mxu0 0.0
        %1116 = vmatpush1.xpose.msra.mxu0 0.0
        %1117 = vmatprep.subr.mxu0 0.0
        %1118 = vmatpush1.xpose.msra.mxu0 0.0
        %1119 = vmatprep.subr.mxu0 0.0
        %1120 = vmatpush1.xpose.msra.mxu0 0.0
        %1121 = vmatprep.subr.mxu0 0.0
        %1122 = vmatpush1.xpose.msra.mxu0 0.0
        %1123 = vmatprep.subr.mxu0 0.0
        %1124 = vmatpush1.xpose.msra.mxu0 0.0
        %1125 = vmatprep.subr.mxu0 0.0
        %1126 = vmatpush1.xpose.msra.mxu0 0.0
        %1127 = vmatprep.subr.mxu0 0.0
        %1128 = vmatpush1.xpose.msra.mxu0 0.0
        %1129 = vmatprep.subr.mxu0 0.0
        %1130 = vmatpush1.xpose.msra.mxu0 0.0
        %1131 = vmatprep.subr.mxu0 0.0
        %1132 = vmatpush1.xpose.msra.mxu0 0.0
        %1133 = vmatprep.mubr.f32.mxu0 %v676
        %1134 = vmatmul.mubr.f32.gmra.mrb[0].mxu0 %v674
        %v1135 = vpop.f32.mrb[0].mxu0
        %v1136 = vadd.f32 0.0, %v1135
        %v1137 = vpop.f32.mrb[0].mxu0
        %1138 = vmatprep.mubr.f32.mxu0 %v682
        %1139 = vmatmul.mubr.f32.gmra.mrb[0].mxu0 %v680
        %v1140 = vpop.f32.mrb[0].mxu0
        %v1141 = vadd.f32 0.0, %v1140
        %v1142 = vpop.f32.mrb[0].mxu0
        %1143 = vmatprep.mubr.f32.mxu0 %v688
        %1144 = vmatmul.mubr.f32.gmra.mrb[0].mxu0 %v686
        %v1145 = vpop.f32.mrb[0].mxu0
        %v1146 = vadd.f32 0.0, %v1145
        %v1147 = vpop.f32.mrb[0].mxu0
        %1148 = vmatprep.mubr.f32.mxu0 %v694
        %1149 = vmatmul.mubr.f32.gmra.mrb[0].mxu0 %v692
        %v1150 = vpop.f32.mrb[0].mxu0
        %v1151 = vadd.f32 0.0, %v1150
        %v1152 = vpop.f32.mrb[0].mxu0
        %1153 = vdwg.mxu0
        %1154 = vmatprep.subr.mxu0 %v969
        %1155 = vmatpush1.xpose.msra.mxu0 %v968
        %1156 = vmatprep.subr.mxu0 %v971
        %1157 = vmatpush1.xpose.msra.mxu0 %v970
        %1158 = vmatprep.subr.mxu0 %v973
        %1159 = vmatpush1.xpose.msra.mxu0 %v972
        %1160 = vmatprep.subr.mxu0 %v975
        %1161 = vmatpush1.xpose.msra.mxu0 %v974
        %1162 = vmatprep.subr.mxu0 0.0
        %1163 = vmatpush1.xpose.msra.mxu0 0.0
        %1164 = vmatprep.subr.mxu0 0.0
        %1165 = vmatpush1.xpose.msra.mxu0 0.0
        %1166 = vmatprep.subr.mxu0 0.0
        %1167 = vmatpush1.xpose.msra.mxu0 0.0
        %1168 = vmatprep.subr.mxu0 0.0
        %1169 = vmatpush1.xpose.msra.mxu0 0.0
        %1170 = vmatprep.subr.mxu0 0.0
        %1171 = vmatpush1.xpose.msra.mxu0 0.0
        %1172 = vmatprep.subr.mxu0 0.0
        %1173 = vmatpush1.xpose.msra.mxu0 0.0
        %1174 = vmatprep.subr.mxu0 0.0
        %1175 = vmatpush1.xpose.msra.mxu0 0.0
        %1176 = vmatprep.subr.mxu0 0.0
        %1177 = vmatpush1.xpose.msra.mxu0 0.0
        %1178 = vmatprep.subr.mxu0 0.0
        %1179 = vmatpush1.xpose.msra.mxu0 0.0
        %1180 = vmatprep.subr.mxu0 0.0
        %1181 = vmatpush1.xpose.msra.mxu0 0.0
        %1182 = vmatprep.subr.mxu0 0.0
        %1183 = vmatpush1.xpose.msra.mxu0 0.0
        %1184 = vmatprep.subr.mxu0 0.0
        %1185 = vmatpush1.xpose.msra.mxu0 0.0
        %1186 = vmatprep.subr.mxu0 0.0
        %1187 = vmatpush1.xpose.msra.mxu0 0.0
        %1188 = vmatprep.subr.mxu0 0.0
        %1189 = vmatpush1.xpose.msra.mxu0 0.0
        %1190 = vmatprep.subr.mxu0 0.0
        %1191 = vmatpush1.xpose.msra.mxu0 0.0
        %1192 = vmatprep.subr.mxu0 0.0
        %1193 = vmatpush1.xpose.msra.mxu0 0.0
        %1194 = vmatprep.subr.mxu0 0.0
        %1195 = vmatpush1.xpose.msra.mxu0 0.0
        %1196 = vmatprep.subr.mxu0 0.0
        %1197 = vmatpush1.xpose.msra.mxu0 0.0
        %1198 = vmatprep.subr.mxu0 0.0
        %1199 = vmatpush1.xpose.msra.mxu0 0.0
        %1200 = vmatprep.subr.mxu0 0.0
        %1201 = vmatpush1.xpose.msra.mxu0 0.0
        %1202 = vmatprep.subr.mxu0 0.0
        %1203 = vmatpush1.xpose.msra.mxu0 0.0
        %1204 = vmatprep.subr.mxu0 0.0
        %1205 = vmatpush1.xpose.msra.mxu0 0.0
        %1206 = vmatprep.subr.mxu0 0.0
        %1207 = vmatpush1.xpose.msra.mxu0 0.0
        %1208 = vmatprep.subr.mxu0 0.0
        %1209 = vmatpush1.xpose.msra.mxu0 0.0
        %1210 = vmatprep.subr.mxu0 0.0
        %1211 = vmatpush1.xpose.msra.mxu0 0.0
        %1212 = vmatprep.subr.mxu0 0.0
        %1213 = vmatpush1.xpose.msra.mxu0 0.0
        %1214 = vmatprep.subr.mxu0 0.0
        %1215 = vmatpush1.xpose.msra.mxu0 0.0
        %1216 = vmatprep.subr.mxu0 0.0
        %1217 = vmatpush1.xpose.msra.mxu0 0.0
        %1218 = vmatprep.mubr.f32.mxu0 %v700
        %1219 = vmatmul.mubr.f32.gmra.mrb[0].mxu0 %v698
        %v1220 = vpop.f32.mrb[0].mxu0
        %v1221 = vadd.f32 0.0, %v1220
        %v1222 = vpop.f32.mrb[0].mxu0
        %1223 = vmatprep.mubr.f32.mxu0 %v706
        %1224 = vmatmul.mubr.f32.gmra.mrb[0].mxu0 %v704
        %v1225 = vpop.f32.mrb[0].mxu0
        %v1226 = vadd.f32 0.0, %v1225
        %v1227 = vpop.f32.mrb[0].mxu0
        %1228 = vmatprep.mubr.f32.mxu0 %v712
        %1229 = vmatmul.mubr.f32.gmra.mrb[0].mxu0 %v710
        %v1230 = vpop.f32.mrb[0].mxu0
        %v1231 = vadd.f32 0.0, %v1230
        %v1232 = vpop.f32.mrb[0].mxu0
        %1233 = vmatprep.mubr.f32.mxu0 %v718
        %1234 = vmatmul.mubr.f32.gmra.mrb[0].mxu0 %v716
        %v1235 = vpop.f32.mrb[0].mxu0
        %v1236 = vadd.f32 0.0, %v1235
        %v1237 = vpop.f32.mrb[0].mxu0
        %1238 = vdwg.mxu0
        %1239 = vmatprep.subr.mxu0 %v977
        %1240 = vmatpush1.xpose.msra.mxu0 %v976
        %1241 = vmatprep.subr.mxu0 %v979
        %1242 = vmatpush1.xpose.msra.mxu0 %v978
        %1243 = vmatprep.subr.mxu0 %v981
        %1244 = vmatpush1.xpose.msra.mxu0 %v980
        %1245 = vmatprep.subr.mxu0 %v983
        %1246 = vmatpush1.xpose.msra.mxu0 %v982
        %1247 = vmatprep.subr.mxu0 0.0
        %1248 = vmatpush1.xpose.msra.mxu0 0.0
        %1249 = vmatprep.subr.mxu0 0.0
        %1250 = vmatpush1.xpose.msra.mxu0 0.0
        %1251 = vmatprep.subr.mxu0 0.0
        %1252 = vmatpush1.xpose.msra.mxu0 0.0
        %1253 = vmatprep.subr.mxu0 0.0
        %1254 = vmatpush1.xpose.msra.mxu0 0.0
        %1255 = vmatprep.subr.mxu0 0.0
        %1256 = vmatpush1.xpose.msra.mxu0 0.0
        %1257 = vmatprep.subr.mxu0 0.0
        %1258 = vmatpush1.xpose.msra.mxu0 0.0
        %1259 = vmatprep.subr.mxu0 0.0
        %1260 = vmatpush1.xpose.msra.mxu0 0.0
        %1261 = vmatprep.subr.mxu0 0.0
        %1262 = vmatpush1.xpose.msra.mxu0 0.0
        %1263 = vmatprep.subr.mxu0 0.0
        %1264 = vmatpush1.xpose.msra.mxu0 0.0
        %1265 = vmatprep.subr.mxu0 0.0
        %1266 = vmatpush1.xpose.msra.mxu0 0.0
        %1267 = vmatprep.subr.mxu0 0.0
        %1268 = vmatpush1.xpose.msra.mxu0 0.0
        %1269 = vmatprep.subr.mxu0 0.0
        %1270 = vmatpush1.xpose.msra.mxu0 0.0
        %1271 = vmatprep.subr.mxu0 0.0
        %1272 = vmatpush1.xpose.msra.mxu0 0.0
        %1273 = vmatprep.subr.mxu0 0.0
        %1274 = vmatpush1.xpose.msra.mxu0 0.0
        %1275 = vmatprep.subr.mxu0 0.0
        %1276 = vmatpush1.xpose.msra.mxu0 0.0
        %1277 = vmatprep.subr.mxu0 0.0
        %1278 = vmatpush1.xpose.msra.mxu0 0.0
        %1279 = vmatprep.subr.mxu0 0.0
        %1280 = vmatpush1.xpose.msra.mxu0 0.0
        %1281 = vmatprep.subr.mxu0 0.0
        %1282 = vmatpush1.xpose.msra.mxu0 0.0
        %1283 = vmatprep.subr.mxu0 0.0
        %1284 = vmatpush1.xpose.msra.mxu0 0.0
        %1285 = vmatprep.subr.mxu0 0.0
        %1286 = vmatpush1.xpose.msra.mxu0 0.0
        %1287 = vmatprep.subr.mxu0 0.0
        %1288 = vmatpush1.xpose.msra.mxu0 0.0
        %1289 = vmatprep.subr.mxu0 0.0
        %1290 = vmatpush1.xpose.msra.mxu0 0.0
        %1291 = vmatprep.subr.mxu0 0.0
        %1292 = vmatpush1.xpose.msra.mxu0 0.0
        %1293 = vmatprep.subr.mxu0 0.0
        %1294 = vmatpush1.xpose.msra.mxu0 0.0
        %1295 = vmatprep.subr.mxu0 0.0
        %1296 = vmatpush1.xpose.msra.mxu0 0.0
        %1297 = vmatprep.subr.mxu0 0.0
        %1298 = vmatpush1.xpose.msra.mxu0 0.0
        %1299 = vmatprep.subr.mxu0 0.0
        %1300 = vmatpush1.xpose.msra.mxu0 0.0
        %1301 = vmatprep.subr.mxu0 0.0
        %1302 = vmatpush1.xpose.msra.mxu0 0.0
        %1303 = vmatprep.mubr.f32.mxu0 %v724
        %1304 = vmatmul.mubr.f32.gmra.mrb[0].mxu0 %v722
        %v1305 = vpop.f32.mrb[0].mxu0
        %v1306 = vadd.f32 0.0, %v1305
        %v1307 = vpop.f32.mrb[0].mxu0
        %1308 = vmatprep.mubr.f32.mxu0 %v730
        %1309 = vmatmul.mubr.f32.gmra.mrb[0].mxu0 %v728
        %v1310 = vpop.f32.mrb[0].mxu0
        %v1311 = vadd.f32 0.0, %v1310
        %v1312 = vpop.f32.mrb[0].mxu0
        %1313 = vmatprep.mubr.f32.mxu0 %v736
        %1314 = vmatmul.mubr.f32.gmra.mrb[0].mxu0 %v734
        %v1315 = vpop.f32.mrb[0].mxu0
        %v1316 = vadd.f32 0.0, %v1315
        %v1317 = vpop.f32.mrb[0].mxu0
        %1318 = vmatprep.mubr.f32.mxu0 %v742
        %1319 = vmatmul.mubr.f32.gmra.mrb[0].mxu0 %v740
        %v1320 = vpop.f32.mrb[0].mxu0
        %v1321 = vadd.f32 0.0, %v1320
        %v1322 = vpop.f32.mrb[0].mxu0
        %1323 = vdwg.mxu0
        %vm1324 = vcmask 261120
        %v1326 = vsel %vm1324, %v1051, 0
        %v1329 = vsel %vm1324, %v1056, 0
        %v1332 = vsel %vm1324, %v1061, 0
        %v1335 = vsel %vm1324, %v1066, 0
        %1337 = vmatprep.subr.mxu0 %v460
        %1338 = vmatpush1.msra.mxu0 %v458
        %1339 = vmatprep.subr.mxu0 %v466
        %1340 = vmatpush1.msra.mxu0 %v464
        %1341 = vmatprep.subr.mxu0 %v472
        %1342 = vmatpush1.msra.mxu0 %v470
        %1343 = vmatprep.subr.mxu0 %v478
        %1344 = vmatpush1.msra.mxu0 %v476
        %1345 = vmatprep.subr.mxu0 0.0
        %1346 = vmatpush1.msra.mxu0 0.0
        %1347 = vmatprep.subr.mxu0 0.0
        %1348 = vmatpush1.msra.mxu0 0.0
        %1349 = vmatprep.subr.mxu0 0.0
        %1350 = vmatpush1.msra.mxu0 0.0
        %1351 = vmatprep.subr.mxu0 0.0
        %1352 = vmatpush1.msra.mxu0 0.0
        %1353 = vmatprep.subr.mxu0 0.0
        %1354 = vmatpush1.msra.mxu0 0.0
        %1355 = vmatprep.subr.mxu0 0.0
        %1356 = vmatpush1.msra.mxu0 0.0
        %1357 = vmatprep.subr.mxu0 0.0
        %1358 = vmatpush1.msra.mxu0 0.0
        %1359 = vmatprep.subr.mxu0 0.0
        %1360 = vmatpush1.msra.mxu0 0.0
        %1361 = vmatprep.subr.mxu0 0.0
        %1362 = vmatpush1.msra.mxu0 0.0
        %1363 = vmatprep.subr.mxu0 0.0
        %1364 = vmatpush1.msra.mxu0 0.0
        %1365 = vmatprep.subr.mxu0 0.0
        %1366 = vmatpush1.msra.mxu0 0.0
        %1367 = vmatprep.subr.mxu0 0.0
        %1368 = vmatpush1.msra.mxu0 0.0
        %1369 = vmatprep.subr.mxu0 0.0
        %1370 = vmatpush1.msra.mxu0 0.0
        %1371 = vmatprep.subr.mxu0 0.0
        %1372 = vmatpush1.msra.mxu0 0.0
        %1373 = vmatprep.subr.mxu0 0.0
        %1374 = vmatpush1.msra.mxu0 0.0
        %1375 = vmatprep.subr.mxu0 0.0
        %1376 = vmatpush1.msra.mxu0 0.0
        %1377 = vmatprep.subr.mxu0 0.0
        %1378 = vmatpush1.msra.mxu0 0.0
        %1379 = vmatprep.subr.mxu0 0.0
        %1380 = vmatpush1.msra.mxu0 0.0
        %1381 = vmatprep.subr.mxu0 0.0
        %1382 = vmatpush1.msra.mxu0 0.0
        %1383 = vmatprep.subr.mxu0 0.0
        %1384 = vmatpush1.msra.mxu0 0.0
        %1385 = vmatprep.subr.mxu0 0.0
        %1386 = vmatpush1.msra.mxu0 0.0
        %1387 = vmatprep.subr.mxu0 0.0
        %1388 = vmatpush1.msra.mxu0 0.0
        %1389 = vmatprep.subr.mxu0 0.0
        %1390 = vmatpush1.msra.mxu0 0.0
        %1391 = vmatprep.subr.mxu0 0.0
        %1392 = vmatpush1.msra.mxu0 0.0
        %1393 = vmatprep.subr.mxu0 0.0
        %1394 = vmatpush1.msra.mxu0 0.0
        %1395 = vmatprep.subr.mxu0 0.0
        %1396 = vmatpush1.msra.mxu0 0.0
        %1397 = vmatprep.subr.mxu0 0.0
        %1398 = vmatpush1.msra.mxu0 0.0
        %1399 = vmatprep.subr.mxu0 0.0
        %1400 = vmatpush1.msra.mxu0 0.0
        %1401 = vmatprep.mubr.f32.mxu0 0.0
        %1402 = vmatmul.mubr.f32.gmra.mrb[0].mxu0 %v1326
        %v1403 = vpop.f32.mrb[0].mxu0
        %v1404 = vadd.f32 0.0, %v1403
        %v1405 = vpop.f32.mrb[0].mxu0
        %v1406 = vadd.f32 0.0, %v1405
        %1407 = vmatprep.mubr.f32.mxu0 0.0
        %1408 = vmatmul.mubr.f32.gmra.mrb[0].mxu0 %v1329
        %v1409 = vpop.f32.mrb[0].mxu0
        %v1410 = vadd.f32 0.0, %v1409
        %v1411 = vpop.f32.mrb[0].mxu0
        %v1412 = vadd.f32 0.0, %v1411
        %1413 = vmatprep.mubr.f32.mxu0 0.0
        %1414 = vmatmul.mubr.f32.gmra.mrb[0].mxu0 %v1332
        %v1415 = vpop.f32.mrb[0].mxu0
        %v1416 = vadd.f32 0.0, %v1415
        %v1417 = vpop.f32.mrb[0].mxu0
        %v1418 = vadd.f32 0.0, %v1417
        %1419 = vmatprep.mubr.f32.mxu0 0.0
        %1420 = vmatmul.mubr.f32.gmra.mrb[0].mxu0 %v1335
        %v1421 = vpop.f32.mrb[0].mxu0
        %v1422 = vadd.f32 0.0, %v1421
        %v1423 = vpop.f32.mrb[0].mxu0
        %v1424 = vadd.f32 0.0, %v1423
        %1425 = vdwg.mxu0
        %v1427 = vsel %vm1324, %v1136, 0
        %v1430 = vsel %vm1324, %v1141, 0
        %v1433 = vsel %vm1324, %v1146, 0
        %v1436 = vsel %vm1324, %v1151, 0
        %1438 = vmatprep.subr.mxu0 %v484
        %1439 = vmatpush1.msra.mxu0 %v482
        %1440 = vmatprep.subr.mxu0 %v490
        %1441 = vmatpush1.msra.mxu0 %v488
        %1442 = vmatprep.subr.mxu0 %v496
        %1443 = vmatpush1.msra.mxu0 %v494
        %1444 = vmatprep.subr.mxu0 %v502
        %1445 = vmatpush1.msra.mxu0 %v500
        %1446 = vmatprep.subr.mxu0 0.0
        %1447 = vmatpush1.msra.mxu0 0.0
        %1448 = vmatprep.subr.mxu0 0.0
        %1449 = vmatpush1.msra.mxu0 0.0
        %1450 = vmatprep.subr.mxu0 0.0
        %1451 = vmatpush1.msra.mxu0 0.0
        %1452 = vmatprep.subr.mxu0 0.0
        %1453 = vmatpush1.msra.mxu0 0.0
        %1454 = vmatprep.subr.mxu0 0.0
        %1455 = vmatpush1.msra.mxu0 0.0
        %1456 = vmatprep.subr.mxu0 0.0
        %1457 = vmatpush1.msra.mxu0 0.0
        %1458 = vmatprep.subr.mxu0 0.0
        %1459 = vmatpush1.msra.mxu0 0.0
        %1460 = vmatprep.subr.mxu0 0.0
        %1461 = vmatpush1.msra.mxu0 0.0
        %1462 = vmatprep.subr.mxu0 0.0
        %1463 = vmatpush1.msra.mxu0 0.0
        %1464 = vmatprep.subr.mxu0 0.0
        %1465 = vmatpush1.msra.mxu0 0.0
        %1466 = vmatprep.subr.mxu0 0.0
        %1467 = vmatpush1.msra.mxu0 0.0
        %1468 = vmatprep.subr.mxu0 0.0
        %1469 = vmatpush1.msra.mxu0 0.0
        %1470 = vmatprep.subr.mxu0 0.0
        %1471 = vmatpush1.msra.mxu0 0.0
        %1472 = vmatprep.subr.mxu0 0.0
        %1473 = vmatpush1.msra.mxu0 0.0
        %1474 = vmatprep.subr.mxu0 0.0
        %1475 = vmatpush1.msra.mxu0 0.0
        %1476 = vmatprep.subr.mxu0 0.0
        %1477 = vmatpush1.msra.mxu0 0.0
        %1478 = vmatprep.subr.mxu0 0.0
        %1479 = vmatpush1.msra.mxu0 0.0
        %1480 = vmatprep.subr.mxu0 0.0
        %1481 = vmatpush1.msra.mxu0 0.0
        %1482 = vmatprep.subr.mxu0 0.0
        %1483 = vmatpush1.msra.mxu0 0.0
        %1484 = vmatprep.subr.mxu0 0.0
        %1485 = vmatpush1.msra.mxu0 0.0
        %1486 = vmatprep.subr.mxu0 0.0
        %1487 = vmatpush1.msra.mxu0 0.0
        %1488 = vmatprep.subr.mxu0 0.0
        %1489 = vmatpush1.msra.mxu0 0.0
        %1490 = vmatprep.subr.mxu0 0.0
        %1491 = vmatpush1.msra.mxu0 0.0
        %1492 = vmatprep.subr.mxu0 0.0
        %1493 = vmatpush1.msra.mxu0 0.0
        %1494 = vmatprep.subr.mxu0 0.0
        %1495 = vmatpush1.msra.mxu0 0.0
        %1496 = vmatprep.subr.mxu0 0.0
        %1497 = vmatpush1.msra.mxu0 0.0
        %1498 = vmatprep.subr.mxu0 0.0
        %1499 = vmatpush1.msra.mxu0 0.0
        %1500 = vmatprep.subr.mxu0 0.0
        %1501 = vmatpush1.msra.mxu0 0.0
        %1502 = vmatprep.mubr.f32.mxu0 0.0
        %1503 = vmatmul.mubr.f32.gmra.mrb[0].mxu0 %v1427
        %v1504 = vpop.f32.mrb[0].mxu0
        %v1505 = vadd.f32 0.0, %v1504
        %v1506 = vpop.f32.mrb[0].mxu0
        %v1507 = vadd.f32 0.0, %v1506
        %1508 = vmatprep.mubr.f32.mxu0 0.0
        %1509 = vmatmul.mubr.f32.gmra.mrb[0].mxu0 %v1430
        %v1510 = vpop.f32.mrb[0].mxu0
        %v1511 = vadd.f32 0.0, %v1510
        %v1512 = vpop.f32.mrb[0].mxu0
        %v1513 = vadd.f32 0.0, %v1512
        %1514 = vmatprep.mubr.f32.mxu0 0.0
        %1515 = vmatmul.mubr.f32.gmra.mrb[0].mxu0 %v1433
        %v1516 = vpop.f32.mrb[0].mxu0
        %v1517 = vadd.f32 0.0, %v1516
        %v1518 = vpop.f32.mrb[0].mxu0
        %v1519 = vadd.f32 0.0, %v1518
        %1520 = vmatprep.mubr.f32.mxu0 0.0
        %1521 = vmatmul.mubr.f32.gmra.mrb[0].mxu0 %v1436
        %v1522 = vpop.f32.mrb[0].mxu0
        %v1523 = vadd.f32 0.0, %v1522
        %v1524 = vpop.f32.mrb[0].mxu0
        %v1525 = vadd.f32 0.0, %v1524
        %1526 = vdwg.mxu0
        %v1528 = vsel %vm1324, %v1221, 0
        %v1531 = vsel %vm1324, %v1226, 0
        %v1534 = vsel %vm1324, %v1231, 0
        %v1537 = vsel %vm1324, %v1236, 0
        %1539 = vmatprep.subr.mxu0 %v508
        %1540 = vmatpush1.msra.mxu0 %v506
        %1541 = vmatprep.subr.mxu0 %v514
        %1542 = vmatpush1.msra.mxu0 %v512
        %1543 = vmatprep.subr.mxu0 %v520
        %1544 = vmatpush1.msra.mxu0 %v518
        %1545 = vmatprep.subr.mxu0 %v526
        %1546 = vmatpush1.msra.mxu0 %v524
        %1547 = vmatprep.subr.mxu0 0.0
        %1548 = vmatpush1.msra.mxu0 0.0
        %1549 = vmatprep.subr.mxu0 0.0
        %1550 = vmatpush1.msra.mxu0 0.0
        %1551 = vmatprep.subr.mxu0 0.0
        %1552 = vmatpush1.msra.mxu0 0.0
        %1553 = vmatprep.subr.mxu0 0.0
        %1554 = vmatpush1.msra.mxu0 0.0
        %1555 = vmatprep.subr.mxu0 0.0
        %1556 = vmatpush1.msra.mxu0 0.0
        %1557 = vmatprep.subr.mxu0 0.0
        %1558 = vmatpush1.msra.mxu0 0.0
        %1559 = vmatprep.subr.mxu0 0.0
        %1560 = vmatpush1.msra.mxu0 0.0
        %1561 = vmatprep.subr.mxu0 0.0
        %1562 = vmatpush1.msra.mxu0 0.0
        %1563 = vmatprep.subr.mxu0 0.0
        %1564 = vmatpush1.msra.mxu0 0.0
        %1565 = vmatprep.subr.mxu0 0.0
        %1566 = vmatpush1.msra.mxu0 0.0
        %1567 = vmatprep.subr.mxu0 0.0
        %1568 = vmatpush1.msra.mxu0 0.0
        %1569 = vmatprep.subr.mxu0 0.0
        %1570 = vmatpush1.msra.mxu0 0.0
        %1571 = vmatprep.subr.mxu0 0.0
        %1572 = vmatpush1.msra.mxu0 0.0
        %1573 = vmatprep.subr.mxu0 0.0
        %1574 = vmatpush1.msra.mxu0 0.0
        %1575 = vmatprep.subr.mxu0 0.0
        %1576 = vmatpush1.msra.mxu0 0.0
        %1577 = vmatprep.subr.mxu0 0.0
        %1578 = vmatpush1.msra.mxu0 0.0
        %1579 = vmatprep.subr.mxu0 0.0
        %1580 = vmatpush1.msra.mxu0 0.0
        %1581 = vmatprep.subr.mxu0 0.0
        %1582 = vmatpush1.msra.mxu0 0.0
        %1583 = vmatprep.subr.mxu0 0.0
        %1584 = vmatpush1.msra.mxu0 0.0
        %1585 = vmatprep.subr.mxu0 0.0
        %1586 = vmatpush1.msra.mxu0 0.0
        %1587 = vmatprep.subr.mxu0 0.0
        %1588 = vmatpush1.msra.mxu0 0.0
        %1589 = vmatprep.subr.mxu0 0.0
        %1590 = vmatpush1.msra.mxu0 0.0
        %1591 = vmatprep.subr.mxu0 0.0
        %1592 = vmatpush1.msra.mxu0 0.0
        %1593 = vmatprep.subr.mxu0 0.0
        %1594 = vmatpush1.msra.mxu0 0.0
        %1595 = vmatprep.subr.mxu0 0.0
        %1596 = vmatpush1.msra.mxu0 0.0
        %1597 = vmatprep.subr.mxu0 0.0
        %1598 = vmatpush1.msra.mxu0 0.0
        %1599 = vmatprep.subr.mxu0 0.0
        %1600 = vmatpush1.msra.mxu0 0.0
        %1601 = vmatprep.subr.mxu0 0.0
        %1602 = vmatpush1.msra.mxu0 0.0
        %1603 = vmatprep.mubr.f32.mxu0 0.0
        %1604 = vmatmul.mubr.f32.gmra.mrb[0].mxu0 %v1528
        %v1605 = vpop.f32.mrb[0].mxu0
        %v1606 = vadd.f32 0.0, %v1605
        %v1607 = vpop.f32.mrb[0].mxu0
        %v1608 = vadd.f32 0.0, %v1607
        %1609 = vmatprep.mubr.f32.mxu0 0.0
        %1610 = vmatmul.mubr.f32.gmra.mrb[0].mxu0 %v1531
        %v1611 = vpop.f32.mrb[0].mxu0
        %v1612 = vadd.f32 0.0, %v1611
        %v1613 = vpop.f32.mrb[0].mxu0
        %v1614 = vadd.f32 0.0, %v1613
        %1615 = vmatprep.mubr.f32.mxu0 0.0
        %1616 = vmatmul.mubr.f32.gmra.mrb[0].mxu0 %v1534
        %v1617 = vpop.f32.mrb[0].mxu0
        %v1618 = vadd.f32 0.0, %v1617
        %v1619 = vpop.f32.mrb[0].mxu0
        %v1620 = vadd.f32 0.0, %v1619
        %1621 = vmatprep.mubr.f32.mxu0 0.0
        %1622 = vmatmul.mubr.f32.gmra.mrb[0].mxu0 %v1537
        %v1623 = vpop.f32.mrb[0].mxu0
        %v1624 = vadd.f32 0.0, %v1623
        %v1625 = vpop.f32.mrb[0].mxu0
        %v1626 = vadd.f32 0.0, %v1625
        %1627 = vdwg.mxu0
        %v1629 = vsel %vm1324, %v1306, 0
        %v1632 = vsel %vm1324, %v1311, 0
        %v1635 = vsel %vm1324, %v1316, 0
        %v1638 = vsel %vm1324, %v1321, 0
        %1640 = vmatprep.subr.mxu0 %v532
        %1641 = vmatpush1.msra.mxu0 %v530
        %1642 = vmatprep.subr.mxu0 %v538
        %1643 = vmatpush1.msra.mxu0 %v536
        %1644 = vmatprep.subr.mxu0 %v544
        %1645 = vmatpush1.msra.mxu0 %v542
        %1646 = vmatprep.subr.mxu0 %v550
        %1647 = vmatpush1.msra.mxu0 %v548
        %1648 = vmatprep.subr.mxu0 0.0
        %1649 = vmatpush1.msra.mxu0 0.0
        %1650 = vmatprep.subr.mxu0 0.0
        %1651 = vmatpush1.msra.mxu0 0.0
        %1652 = vmatprep.subr.mxu0 0.0
        %1653 = vmatpush1.msra.mxu0 0.0
        %1654 = vmatprep.subr.mxu0 0.0
        %1655 = vmatpush1.msra.mxu0 0.0
        %1656 = vmatprep.subr.mxu0 0.0
        %1657 = vmatpush1.msra.mxu0 0.0
        %1658 = vmatprep.subr.mxu0 0.0
        %1659 = vmatpush1.msra.mxu0 0.0
        %1660 = vmatprep.subr.mxu0 0.0
        %1661 = vmatpush1.msra.mxu0 0.0
        %1662 = vmatprep.subr.mxu0 0.0
        %1663 = vmatpush1.msra.mxu0 0.0
        %1664 = vmatprep.subr.mxu0 0.0
        %1665 = vmatpush1.msra.mxu0 0.0
        %1666 = vmatprep.subr.mxu0 0.0
        %1667 = vmatpush1.msra.mxu0 0.0
        %1668 = vmatprep.subr.mxu0 0.0
        %1669 = vmatpush1.msra.mxu0 0.0
        %1670 = vmatprep.subr.mxu0 0.0
        %1671 = vmatpush1.msra.mxu0 0.0
        %1672 = vmatprep.subr.mxu0 0.0
        %1673 = vmatpush1.msra.mxu0 0.0
        %1674 = vmatprep.subr.mxu0 0.0
        %1675 = vmatpush1.msra.mxu0 0.0
        %1676 = vmatprep.subr.mxu0 0.0
        %1677 = vmatpush1.msra.mxu0 0.0
        %1678 = vmatprep.subr.mxu0 0.0
        %1679 = vmatpush1.msra.mxu0 0.0
        %1680 = vmatprep.subr.mxu0 0.0
        %1681 = vmatpush1.msra.mxu0 0.0
        %1682 = vmatprep.subr.mxu0 0.0
        %1683 = vmatpush1.msra.mxu0 0.0
        %1684 = vmatprep.subr.mxu0 0.0
        %1685 = vmatpush1.msra.mxu0 0.0
        %1686 = vmatprep.subr.mxu0 0.0
        %1687 = vmatpush1.msra.mxu0 0.0
        %1688 = vmatprep.subr.mxu0 0.0
        %1689 = vmatpush1.msra.mxu0 0.0
        %1690 = vmatprep.subr.mxu0 0.0
        %1691 = vmatpush1.msra.mxu0 0.0
        %1692 = vmatprep.subr.mxu0 0.0
        %1693 = vmatpush1.msra.mxu0 0.0
        %1694 = vmatprep.subr.mxu0 0.0
        %1695 = vmatpush1.msra.mxu0 0.0
        %1696 = vmatprep.subr.mxu0 0.0
        %1697 = vmatpush1.msra.mxu0 0.0
        %1698 = vmatprep.subr.mxu0 0.0
        %1699 = vmatpush1.msra.mxu0 0.0
        %1700 = vmatprep.subr.mxu0 0.0
        %1701 = vmatpush1.msra.mxu0 0.0
        %1702 = vmatprep.subr.mxu0 0.0
        %1703 = vmatpush1.msra.mxu0 0.0
        %1704 = vmatprep.mubr.f32.mxu0 0.0
        %1705 = vmatmul.mubr.f32.gmra.mrb[0].mxu0 %v1629
        %v1706 = vpop.f32.mrb[0].mxu0
        %v1707 = vadd.f32 0.0, %v1706
        %v1708 = vpop.f32.mrb[0].mxu0
        %v1709 = vadd.f32 0.0, %v1708
        %1710 = vmatprep.mubr.f32.mxu0 0.0
        %1711 = vmatmul.mubr.f32.gmra.mrb[0].mxu0 %v1632
        %v1712 = vpop.f32.mrb[0].mxu0
        %v1713 = vadd.f32 0.0, %v1712
        %v1714 = vpop.f32.mrb[0].mxu0
        %v1715 = vadd.f32 0.0, %v1714
        %1716 = vmatprep.mubr.f32.mxu0 0.0
        %1717 = vmatmul.mubr.f32.gmra.mrb[0].mxu0 %v1635
        %v1718 = vpop.f32.mrb[0].mxu0
        %v1719 = vadd.f32 0.0, %v1718
        %v1720 = vpop.f32.mrb[0].mxu0
        %v1721 = vadd.f32 0.0, %v1720
        %1722 = vmatprep.mubr.f32.mxu0 0.0
        %1723 = vmatmul.mubr.f32.gmra.mrb[0].mxu0 %v1638
        %v1724 = vpop.f32.mrb[0].mxu0
        %v1725 = vadd.f32 0.0, %v1724
        %v1726 = vpop.f32.mrb[0].mxu0
        %v1727 = vadd.f32 0.0, %v1726
        %1728 = vdwg.mxu0
        %v1729 = vld [vmem:[%s2] sm:$0xff]
        %v1730 = vld [vmem:[%s3] sm:$0xff]
        %1732 = vset.pattern.permute.xlu0 0
        %1733 = vperm.xlu0 %1732, %v1730
        %v1734 = vpop.permute.xlu0 %1733
        %1736 = vmatprep.subr.mxu0 %v1406
        %1737 = vmatpush1.msra.mxu0 %v1404
        %1738 = vmatprep.subr.mxu0 %v1412
        %1739 = vmatpush1.msra.mxu0 %v1410
        %1740 = vmatprep.subr.mxu0 %v1418
        %1741 = vmatpush1.msra.mxu0 %v1416
        %1742 = vmatprep.subr.mxu0 %v1424
        %1743 = vmatpush1.msra.mxu0 %v1422
        %1744 = vmatprep.subr.mxu0 %v1507
        %1745 = vmatpush1.msra.mxu0 %v1505
        %1746 = vmatprep.subr.mxu0 %v1513
        %1747 = vmatpush1.msra.mxu0 %v1511
        %1748 = vmatprep.subr.mxu0 %v1519
        %1749 = vmatpush1.msra.mxu0 %v1517
        %1750 = vmatprep.subr.mxu0 %v1525
        %1751 = vmatpush1.msra.mxu0 %v1523
        %1752 = vmatprep.subr.mxu0 %v1608
        %1753 = vmatpush1.msra.mxu0 %v1606
        %1754 = vmatprep.subr.mxu0 %v1614
        %1755 = vmatpush1.msra.mxu0 %v1612
        %1756 = vmatprep.subr.mxu0 %v1620
        %1757 = vmatpush1.msra.mxu0 %v1618
        %1758 = vmatprep.subr.mxu0 %v1626
        %1759 = vmatpush1.msra.mxu0 %v1624
        %1760 = vmatprep.subr.mxu0 %v1709
        %1761 = vmatpush1.msra.mxu0 %v1707
        %1762 = vmatprep.subr.mxu0 %v1715
        %1763 = vmatpush1.msra.mxu0 %v1713
        %1764 = vmatprep.subr.mxu0 %v1721
        %1765 = vmatpush1.msra.mxu0 %v1719
        %1766 = vmatprep.subr.mxu0 %v1727
        %1767 = vmatpush1.msra.mxu0 %v1725
        %1768 = vmatprep.subr.mxu0 0.0
        %1769 = vmatpush1.msra.mxu0 0.0
        %1770 = vmatprep.subr.mxu0 0.0
        %1771 = vmatpush1.msra.mxu0 0.0
        %1772 = vmatprep.subr.mxu0 0.0
        %1773 = vmatpush1.msra.mxu0 0.0
        %1774 = vmatprep.subr.mxu0 0.0
        %1775 = vmatpush1.msra.mxu0 0.0
        %1776 = vmatprep.subr.mxu0 0.0
        %1777 = vmatpush1.msra.mxu0 0.0
        %1778 = vmatprep.subr.mxu0 0.0
        %1779 = vmatpush1.msra.mxu0 0.0
        %1780 = vmatprep.subr.mxu0 0.0
        %1781 = vmatpush1.msra.mxu0 0.0
        %1782 = vmatprep.subr.mxu0 0.0
        %1783 = vmatpush1.msra.mxu0 0.0
        %1784 = vmatprep.subr.mxu0 0.0
        %1785 = vmatpush1.msra.mxu0 0.0
        %1786 = vmatprep.subr.mxu0 0.0
        %1787 = vmatpush1.msra.mxu0 0.0
        %1788 = vmatprep.subr.mxu0 0.0
        %1789 = vmatpush1.msra.mxu0 0.0
        %1790 = vmatprep.subr.mxu0 0.0
        %1791 = vmatpush1.msra.mxu0 0.0
        %1792 = vmatprep.subr.mxu0 0.0
        %1793 = vmatpush1.msra.mxu0 0.0
        %1794 = vmatprep.subr.mxu0 0.0
        %1795 = vmatpush1.msra.mxu0 0.0
        %1796 = vmatprep.subr.mxu0 0.0
        %1797 = vmatpush1.msra.mxu0 0.0
        %1798 = vmatprep.subr.mxu0 0.0
        %1799 = vmatpush1.msra.mxu0 0.0
        %1800 = vmatprep.mubr.f32.mxu0 0.0
        %1801 = vmatmul.mubr.f32.gmra.mrb[0].mxu0 %v1729
        %v1802 = vpop.f32.mrb[0].mxu0
        %v1803 = vadd.f32 %v1734, %v1802
        %v1804 = vpop.f32.mrb[0].mxu0
        %v1805 = vadd.f32 %v1734, %v1804
        %1806 = vdwg.mxu0
        %1807 = vst [vmem:[%s190] sm:$0xff] %v1803
        %1808 = vst [vmem:[%s190 + $0x8] sm:$0xff] %v1805
        %s1809 = sand.u32 %s115, 1
        %s1810 = scalar_lea.sflag [#allocation3], %s1809
        %s1811 = sand.u32 %s115, 1
        %s1812 = smul.addr %s1811, 16
        %s1813 = scalar_lea.vmem [#allocation2], %s1812
        // Predicated region
        $region37: #{tpu_custom_call.1} parent=35 // pred_check
          %p1814 = pneg %p125
        $region38: #{tpu_custom_call.1} parent=35 // pred_check_branch
          %1816 = sbr.rel (%p1814) target = $region40
        $region39: #{tpu_custom_call.1} parent=35 // pred_region
          %s1818 = ssub.s32 256, 256
          %1819 = vsyncadd %s1810, %s1818
          %s1820 = smul.addr %s18, 2
          %s1821 = smul.addr %s1820, 128
          %s1822 = scalar_lea.hbm %s4, %s1821
          %s1824 = sshll.u32 %s1813, 4
          %s1825 = int_to_ptr.vmem [resolvable:$true] %s1824
          %1827 = dma.vmem_to_hbm [thread:$0]  %s1825, 256, %s1822, %s1810
        $region40: #{tpu_custom_call.1} parent=35 // pred_fallthru
          _
      $region36: #{tpu_custom_call.1} parent=5 // pred_fallthru
        _
      %p1828 = scmp.le.s32.totalorder 2, %s13
      // Predicated region
      $region41: #{tpu_custom_call.1} parent=5 // pred_check
        %p1829 = pneg %p1828
      $region42: #{tpu_custom_call.1} parent=5 // pred_check_branch
        %1831 = sbr.rel (%p1829) target = $region44
      $region43: #{tpu_custom_call.1} parent=5 // pred_region
        %s1832 = ssub.s32 %s13, 2
        // Predicated region
        $region45: #{tpu_custom_call.1} parent=43 // pred_check
          %p1833 = pneg %p131
        $region46: #{tpu_custom_call.1} parent=43 // pred_check_branch
          %1835 = sbr.rel (%p1833) target = $region48
        $region47: #{tpu_custom_call.1} parent=43 // pred_region
          %s1836 = sand.u32 %s116, 1
          %s1837 = scalar_lea.sflag [#allocation3], %s1836
          %s1838 = sand.u32 %s116, 1
          %s1839 = smul.addr %s1838, 16
          %s1840 = scalar_lea.vmem [#allocation2], %s1839
          %1841 = dma.done %s1837, 256
        $region48: #{tpu_custom_call.1} parent=43 // pred_fallthru
          _
      $region44: #{tpu_custom_call.1} parent=5 // pred_fallthru
        _
    $region6: #{tpu_custom_call.1} parent=1 // loop_footer
      %s17 = sadd.s32 1, %s13
    $region7: #{tpu_custom_call.1} parent=1 // loop_footer_branch
      %12 = sbr.rel target = $region3
    $region8: #{tpu_custom_call.1} parent=1 // loop_exit
      _
    %1842 = vsyncpa [#allocation3], 1
    %s1843 = scalar_lea.sflag [#allocation3], 1
    %1844 = vsyncpa %s1843, 1

</llo_original>
